<compile_context>
chip_gen: v6e
topology: v6e:2x2x1
jax: 0.10.0
libtpu: 0.0.40
codegen_flags: <defaults>
</compile_context>

<pallas_src>
import jax
import jax.numpy as jnp
from jax.experimental import pallas as pl
from jax.experimental.pallas import tpu as pltpu


def _make_conv_kernel(taps, Cin, Le, Wq, Ho, Wo):
    """Per-image conv kernel.

    Refs:
      x_ref:    (1, Cg, Hq*Wq)   bf16 padded input, channels-first, flattened
                                 (Cg = Cin for stride 1, s*s*Cin otherwise).
      w_ref:    (Cout, k*k*Cin)  bf16 weight slab (tap-major, then Cin).
      b_ref:    (Cout, 1)        f32 bias.
      o_ref:    (1, Cout, Ho, Wo) output block, NCHW.
      slab_ref: (k*k*Cin, Le)    bf16 VMEM scratch (in-VMEM im2col slab).
    """

    def kernel(x_ref, w_ref, b_ref, o_ref, slab_ref):
        # In-VMEM im2col: one contiguous shifted copy per kernel tap
        # (never materialized in HBM).
        for t, (c0, off) in enumerate(taps):
            slab_ref[pl.ds(t * Cin, Cin), :] = x_ref[0, pl.ds(c0, Cin),
                                                     pl.ds(off, Le)]
        # Single fused GEMM: (Cout, k*k*Cin) @ (k*k*Cin, Le) -> lane-dense
        # (Cout, Le) f32 accumulator straight off the MXU.
        acc = jnp.dot(w_ref[...], slab_ref[...],
                      preferred_element_type=jnp.float32)
        res = (acc + b_ref[...]).astype(o_ref.dtype)
        # Row-wise store crops the (Wq - Wo) wrap-around columns of the
        # extended flat layout; the result lands directly in NCHW so the
        # wrapper needs no pad/crop HBM pass.
        # TODO(synk): for very large Ho replace this unrolled loop with a
        # fori_loop / second grid axis to bound code size.
        for i in range(Ho):
            o_ref[0, :, i, :] = res[:, i * Wq : i * Wq + Wo]

    return kernel


def conv_layer_forward(x, weight, bias, stride, *, compute_dtype=jnp.bfloat16):
    """Equivalent of ReflectionPad2d(k//2) -> Conv2d(k, stride) on NCHW input."""
    N, Cin, H, W = x.shape
    Cout, Cin_w, k, k2 = weight.shape
    assert Cin == Cin_w and k == k2
    s = int(stride)
    assert s >= 1

    pad = k // 2
    Hp, Wp = H + 2 * pad, W + 2 * pad
    Ho = (Hp - k) // s + 1
    Wo = (Wp - k) // s + 1

    # ReflectionPad2d directly on the NCHW layout (channels-first, no HBM
    # transpose); cast to bf16 once here so the kernel DMA is half the bytes
    # and no casts run in the inner loop.
    xp = jnp.pad(x.astype(compute_dtype),
                 ((0, 0), (0, 0), (pad, pad), (pad, pad)), mode="reflect")

    if s == 1:
        Hq, Wq = Hp, Wp
        Cg = Cin
        x_k = xp.reshape(N, Cin, Hq * Wq)          # free reshape, no HBM pass
        taps = [(0, di * Wq + dj) for di in range(k) for dj in range(k)]
    else:
        # Space-to-depth: fold the (s, s) phase of each padded pixel into the
        # channel dim so every tap reads a *contiguous* (Cin, Le) slice — no
        # strided loads, and FLOPs scale with the strided output, not the
        # dense one.  Zero-padded tail pixels only ever land in cropped
        # (wrap-around) columns.
        Hq, Wq = -(-Hp // s), -(-Wp // s)
        xp = jnp.pad(xp, ((0, 0), (0, 0), (0, Hq * s - Hp), (0, Wq * s - Wp)))
        x_k = (xp.reshape(N, Cin, Hq, s, Wq, s)
                 .transpose(0, 3, 5, 1, 2, 4)      # (N, s, s, Cin, Hq, Wq)
                 .reshape(N, s * s * Cin, Hq * Wq))
        Cg = s * s * Cin
        taps = [((((di % s) * s) + (dj % s)) * Cin,
                 (di // s) * Wq + (dj // s))
                for di in range(k) for dj in range(k)]

    Le = (Ho - 1) * Wq + Wo            # extended flat output length
    KK = k * k * Cin

    # Weight as one resident, lane-dense 2-D slab: (Cout, k*k*Cin), tap-major.
    w2d = jnp.transpose(weight, (0, 2, 3, 1)).reshape(Cout, KK).astype(compute_dtype)
    b2 = bias.reshape(Cout, 1).astype(jnp.float32)

    kernel = _make_conv_kernel(taps, Cin, Le, Wq, Ho, Wo)

    flops = 2 * N * Cout * KK * Le
    bytes_accessed = (x_k.size * x_k.dtype.itemsize
                      + w2d.size * w2d.dtype.itemsize
                      + b2.size * b2.dtype.itemsize
                      + N * Cout * Ho * Wo * x.dtype.itemsize)

    out = pl.pallas_call(
        kernel,
        out_shape=jax.ShapeDtypeStruct((N, Cout, Ho, Wo), x.dtype),
        grid_spec=pltpu.PrefetchScalarGridSpec(
            num_scalar_prefetch=0,
            grid=(N,),                              # one image per grid step
            in_specs=[
                pl.BlockSpec((1, Cg, Hq * Wq), lambda n: (n, 0, 0)),
                pl.BlockSpec((Cout, KK), lambda n: (0, 0)),   # resident weight
                pl.BlockSpec((Cout, 1), lambda n: (0, 0)),    # resident bias
            ],
            out_specs=pl.BlockSpec((1, Cout, Ho, Wo), lambda n: (n, 0, 0, 0)),
            scratch_shapes=[pltpu.VMEM((KK, Le), compute_dtype)],
        ),
        compiler_params=pltpu.CompilerParams(
            dimension_semantics=("parallel",),
            # Below v7x's 64 MiB physical VMEM so double-buffering keeps
            # headroom; toy shapes use only a tiny fraction of this.
            vmem_limit_bytes=48 * 1024 * 1024,
        ),
        cost_estimate=pl.CostEstimate(
            flops=flops, transcendentals=0, bytes_accessed=bytes_accessed),
    )(x_k, w2d, b2)

    return out


if __name__ == "__main__":
    # Shapes consistent with ConvLayer(in_channels=4, out_channels=8,
    # kernel_size=3, stride) applied to a (2, 4, 16, 16) NCHW input.
    N, Cin, H, W = 2, 4, 16, 16
    Cout, k = 8, 3

    key = jax.random.PRNGKey(0)
    kx, kw, kb = jax.random.split(key, 3)
    x = jax.random.normal(kx, (N, Cin, H, W), dtype=jnp.float32)
    weight = 0.1 * jax.random.normal(kw, (Cout, Cin, k, k), dtype=jnp.float32)
    bias = 0.1 * jax.random.normal(kb, (Cout,), dtype=jnp.float32)

    # Reference: reflection pad + VALID conv on bf16-rounded operands (the
    # kernel feeds the MXU bf16 with f32 accumulation; bf16 x bf16 products
    # are exact in f32, so only the summation order differs).  Note: results
    # therefore differ from a pure-f32 PyTorch ConvLayer at ~1e-3 relative.
    x_r = x.astype(jnp.bfloat16).astype(jnp.float32)
    w_r = weight.astype(jnp.bfloat16).astype(jnp.float32)
    pad = k // 2
    xp_ref = jnp.pad(x_r, ((0, 0), (0, 0), (pad, pad), (pad, pad)),
                     mode="reflect")

    for stride in (1, 2):
        y = conv_layer_forward(x, weight, bias, stride)
        y = jax.block_until_ready(y)
        y_ref = jax.lax.conv_general_dilated(
            xp_ref, w_r, (stride, stride), "VALID",
            dimension_numbers=("NCHW", "OIHW", "NCHW")) \
            + bias[None, :, None, None]
        assert y.shape == y_ref.shape, (stride, y.shape, y_ref.shape)
        assert jnp.allclose(y, y_ref, atol=1e-4, rtol=1e-4), \
            f"mismatch at stride={stride}"

    print("KERNEL_OK")
</pallas_src>

<mosaic_0001>
module attributes {stable_mosaic.version = 11 : i64} {
  func.func @kernel(%arg0: i32, %arg1: memref<1x4x324xbf16, #tpu.memory_space<vmem>>, %arg2: memref<8x36xbf16, #tpu.memory_space<vmem>>, %arg3: memref<8x1xf32, #tpu.memory_space<vmem>>, %arg4: memref<1x8x16x16xf32, #tpu.memory_space<vmem>>, %arg5: memref<36x286xbf16, #tpu.memory_space<vmem>>) attributes {dimension_semantics = [#tpu.dimension_semantics<parallel>], iteration_bounds = array<i64: 2>, scalar_prefetch = 0 : i64, scratch_operands = 1 : i64, tpu.core_type = #tpu.core_type<tc>, window_params = [{transform_indices = @transform_0, window_bounds = array<i64: 1, 4, 324>}, {pipeline_mode = #tpu.pipeline_mode<synchronous>, transform_indices = @transform_1, window_bounds = array<i64: 8, 36>}, {pipeline_mode = #tpu.pipeline_mode<synchronous>, transform_indices = @transform_2, window_bounds = array<i64: 8, 1>}, {transform_indices = @transform_3, window_bounds = array<i64: 1, 8, 16, 16>}]} {
    %c0 = arith.constant 0 : index
    %c0_0 = arith.constant 0 : index
    %c0_1 = arith.constant 0 : index
    %0 = vector.load %arg1[%c0, %c0_0, %c0_1] : memref<1x4x324xbf16, #tpu.memory_space<vmem>>, vector<1x4x286xbf16>
    %1 = vector.shape_cast %0 : vector<1x4x286xbf16> to vector<4x286xbf16>
    %c0_2 = arith.constant 0 : index
    %c0_3 = arith.constant 0 : index
    %2 = vector.load %arg5[%c0_2, %c0_3] : memref<36x286xbf16, #tpu.memory_space<vmem>>, vector<4x286xbf16>
    tpu.vector_store %arg5[%c0_2, %c0_3], %1 {strides = array<i32>} : memref<36x286xbf16, #tpu.memory_space<vmem>>, vector<4x286xbf16>,
    %c0_4 = arith.constant 0 : index
    %c0_5 = arith.constant 0 : index
    %c1 = arith.constant 1 : index
    %3 = vector.load %arg1[%c0_4, %c0_5, %c1] : memref<1x4x324xbf16, #tpu.memory_space<vmem>>, vector<1x4x286xbf16>
    %4 = vector.shape_cast %3 : vector<1x4x286xbf16> to vector<4x286xbf16>
    %c4 = arith.constant 4 : index
    %c0_6 = arith.constant 0 : index
    %5 = vector.load %arg5[%c4, %c0_6] : memref<36x286xbf16, #tpu.memory_space<vmem>>, vector<4x286xbf16>
    tpu.vector_store %arg5[%c4, %c0_6], %4 {strides = array<i32>} : memref<36x286xbf16, #tpu.memory_space<vmem>>, vector<4x286xbf16>,
    %c0_7 = arith.constant 0 : index
    %c0_8 = arith.constant 0 : index
    %c2 = arith.constant 2 : index
    %6 = vector.load %arg1[%c0_7, %c0_8, %c2] : memref<1x4x324xbf16, #tpu.memory_space<vmem>>, vector<1x4x286xbf16>
    %7 = vector.shape_cast %6 : vector<1x4x286xbf16> to vector<4x286xbf16>
    %c8 = arith.constant 8 : index
    %c0_9 = arith.constant 0 : index
    %8 = vector.load %arg5[%c8, %c0_9] : memref<36x286xbf16, #tpu.memory_space<vmem>>, vector<4x286xbf16>
    tpu.vector_store %arg5[%c8, %c0_9], %7 {strides = array<i32>} : memref<36x286xbf16, #tpu.memory_space<vmem>>, vector<4x286xbf16>,
    %c0_10 = arith.constant 0 : index
    %c0_11 = arith.constant 0 : index
    %c18 = arith.constant 18 : index
    %9 = vector.load %arg1[%c0_10, %c0_11, %c18] : memref<1x4x324xbf16, #tpu.memory_space<vmem>>, vector<1x4x286xbf16>
    %10 = vector.shape_cast %9 : vector<1x4x286xbf16> to vector<4x286xbf16>
    %c12 = arith.constant 12 : index
    %c0_12 = arith.constant 0 : index
    %11 = vector.load %arg5[%c12, %c0_12] : memref<36x286xbf16, #tpu.memory_space<vmem>>, vector<4x286xbf16>
    tpu.vector_store %arg5[%c12, %c0_12], %10 {strides = array<i32>} : memref<36x286xbf16, #tpu.memory_space<vmem>>, vector<4x286xbf16>,
    %c0_13 = arith.constant 0 : index
    %c0_14 = arith.constant 0 : index
    %c19 = arith.constant 19 : index
    %12 = vector.load %arg1[%c0_13, %c0_14, %c19] : memref<1x4x324xbf16, #tpu.memory_space<vmem>>, vector<1x4x286xbf16>
    %13 = vector.shape_cast %12 : vector<1x4x286xbf16> to vector<4x286xbf16>
    %c16 = arith.constant 16 : index
    %c0_15 = arith.constant 0 : index
    %14 = vector.load %arg5[%c16, %c0_15] : memref<36x286xbf16, #tpu.memory_space<vmem>>, vector<4x286xbf16>
    tpu.vector_store %arg5[%c16, %c0_15], %13 {strides = array<i32>} : memref<36x286xbf16, #tpu.memory_space<vmem>>, vector<4x286xbf16>,
    %c0_16 = arith.constant 0 : index
    %c0_17 = arith.constant 0 : index
    %c20 = arith.constant 20 : index
    %15 = vector.load %arg1[%c0_16, %c0_17, %c20] : memref<1x4x324xbf16, #tpu.memory_space<vmem>>, vector<1x4x286xbf16>
    %16 = vector.shape_cast %15 : vector<1x4x286xbf16> to vector<4x286xbf16>
    %c20_18 = arith.constant 20 : index
    %c0_19 = arith.constant 0 : index
    %17 = vector.load %arg5[%c20_18, %c0_19] : memref<36x286xbf16, #tpu.memory_space<vmem>>, vector<4x286xbf16>
    tpu.vector_store %arg5[%c20_18, %c0_19], %16 {strides = array<i32>} : memref<36x286xbf16, #tpu.memory_space<vmem>>, vector<4x286xbf16>,
    %c0_20 = arith.constant 0 : index
    %c0_21 = arith.constant 0 : index
    %c36 = arith.constant 36 : index
    %18 = vector.load %arg1[%c0_20, %c0_21, %c36] : memref<1x4x324xbf16, #tpu.memory_space<vmem>>, vector<1x4x286xbf16>
    %19 = vector.shape_cast %18 : vector<1x4x286xbf16> to vector<4x286xbf16>
    %c24 = arith.constant 24 : index
    %c0_22 = arith.constant 0 : index
    %20 = vector.load %arg5[%c24, %c0_22] : memref<36x286xbf16, #tpu.memory_space<vmem>>, vector<4x286xbf16>
    tpu.vector_store %arg5[%c24, %c0_22], %19 {strides = array<i32>} : memref<36x286xbf16, #tpu.memory_space<vmem>>, vector<4x286xbf16>,
    %c0_23 = arith.constant 0 : index
    %c0_24 = arith.constant 0 : index
    %c37 = arith.constant 37 : index
    %21 = vector.load %arg1[%c0_23, %c0_24, %c37] : memref<1x4x324xbf16, #tpu.memory_space<vmem>>, vector<1x4x286xbf16>
    %22 = vector.shape_cast %21 : vector<1x4x286xbf16> to vector<4x286xbf16>
    %c28 = arith.constant 28 : index
    %c0_25 = arith.constant 0 : index
    %23 = vector.load %arg5[%c28, %c0_25] : memref<36x286xbf16, #tpu.memory_space<vmem>>, vector<4x286xbf16>
    tpu.vector_store %arg5[%c28, %c0_25], %22 {strides = array<i32>} : memref<36x286xbf16, #tpu.memory_space<vmem>>, vector<4x286xbf16>,
    %c0_26 = arith.constant 0 : index
    %c0_27 = arith.constant 0 : index
    %c38 = arith.constant 38 : index
    %24 = vector.load %arg1[%c0_26, %c0_27, %c38] : memref<1x4x324xbf16, #tpu.memory_space<vmem>>, vector<1x4x286xbf16>
    %25 = vector.shape_cast %24 : vector<1x4x286xbf16> to vector<4x286xbf16>
    %c32 = arith.constant 32 : index
    %c0_28 = arith.constant 0 : index
    %26 = vector.load %arg5[%c32, %c0_28] : memref<36x286xbf16, #tpu.memory_space<vmem>>, vector<4x286xbf16>
    tpu.vector_store %arg5[%c32, %c0_28], %25 {strides = array<i32>} : memref<36x286xbf16, #tpu.memory_space<vmem>>, vector<4x286xbf16>,
    %c0_29 = arith.constant 0 : index
    %c0_30 = arith.constant 0 : index
    %27 = vector.load %arg2[%c0_29, %c0_30] : memref<8x36xbf16, #tpu.memory_space<vmem>>, vector<8x36xbf16>
    %c0_31 = arith.constant 0 : index
    %c0_32 = arith.constant 0 : index
    %28 = vector.load %arg5[%c0_31, %c0_32] : memref<36x286xbf16, #tpu.memory_space<vmem>>, vector<36x286xbf16>
    %cst = arith.constant dense<0.000000e+00> : vector<8x286xf32>
    %29 = tpu.matmul %27, %28, %cst {dimension_numbers = #tpu.dot_dimension_numbers<[1], [0], [0], [1], [0, 0, 1, 1], [], []>} : vector<8x36xbf16>, vector<36x286xbf16>, vector<8x286xf32> -> vector<8x286xf32>
    %c0_33 = arith.constant 0 : index
    %c0_34 = arith.constant 0 : index
    %30 = vector.load %arg3[%c0_33, %c0_34] : memref<8x1xf32, #tpu.memory_space<vmem>>, vector<8x1xf32>
    %31 = vector.broadcast %30 : vector<8x1xf32> to vector<8x286xf32>
    %32 = arith.addf %29, %31 : vector<8x286xf32>
    %33 = vector.extract_strided_slice %32 {offsets = [0, 0], sizes = [8, 16], strides = [1, 1]} : vector<8x286xf32> to vector<8x16xf32>
    %c0_35 = arith.constant 0 : index
    %c0_36 = arith.constant 0 : index
    %c0_37 = arith.constant 0 : index
    %c0_38 = arith.constant 0 : index
    %34 = vector.load %arg4[%c0_35, %c0_36, %c0_37, %c0_38] : memref<1x8x16x16xf32, #tpu.memory_space<vmem>>, vector<1x8x1x16xf32>
    %35 = vector.shape_cast %34 : vector<1x8x1x16xf32> to vector<8x16xf32>
    %36 = vector.shape_cast %33 : vector<8x16xf32> to vector<1x8x1x16xf32>
    tpu.vector_store %arg4[%c0_35, %c0_36, %c0_37, %c0_38], %36 {strides = array<i32>} : memref<1x8x16x16xf32, #tpu.memory_space<vmem>>, vector<1x8x1x16xf32>,
    %37 = vector.extract_strided_slice %32 {offsets = [0, 18], sizes = [8, 16], strides = [1, 1]} : vector<8x286xf32> to vector<8x16xf32>
    %c0_39 = arith.constant 0 : index
    %c0_40 = arith.constant 0 : index
    %c1_41 = arith.constant 1 : index
    %c0_42 = arith.constant 0 : index
    %38 = vector.load %arg4[%c0_39, %c0_40, %c1_41, %c0_42] : memref<1x8x16x16xf32, #tpu.memory_space<vmem>>, vector<1x8x1x16xf32>
    %39 = vector.shape_cast %38 : vector<1x8x1x16xf32> to vector<8x16xf32>
    %40 = vector.shape_cast %37 : vector<8x16xf32> to vector<1x8x1x16xf32>
    tpu.vector_store %arg4[%c0_39, %c0_40, %c1_41, %c0_42], %40 {strides = array<i32>} : memref<1x8x16x16xf32, #tpu.memory_space<vmem>>, vector<1x8x1x16xf32>,
    %41 = vector.extract_strided_slice %32 {offsets = [0, 36], sizes = [8, 16], strides = [1, 1]} : vector<8x286xf32> to vector<8x16xf32>
    %c0_43 = arith.constant 0 : index
    %c0_44 = arith.constant 0 : index
    %c2_45 = arith.constant 2 : index
    %c0_46 = arith.constant 0 : index
    %42 = vector.load %arg4[%c0_43, %c0_44, %c2_45, %c0_46] : memref<1x8x16x16xf32, #tpu.memory_space<vmem>>, vector<1x8x1x16xf32>
    %43 = vector.shape_cast %42 : vector<1x8x1x16xf32> to vector<8x16xf32>
    %44 = vector.shape_cast %41 : vector<8x16xf32> to vector<1x8x1x16xf32>
    tpu.vector_store %arg4[%c0_43, %c0_44, %c2_45, %c0_46], %44 {strides = array<i32>} : memref<1x8x16x16xf32, #tpu.memory_space<vmem>>, vector<1x8x1x16xf32>,
    %45 = vector.extract_strided_slice %32 {offsets = [0, 54], sizes = [8, 16], strides = [1, 1]} : vector<8x286xf32> to vector<8x16xf32>
    %c0_47 = arith.constant 0 : index
    %c0_48 = arith.constant 0 : index
    %c3 = arith.constant 3 : index
    %c0_49 = arith.constant 0 : index
    %46 = vector.load %arg4[%c0_47, %c0_48, %c3, %c0_49] : memref<1x8x16x16xf32, #tpu.memory_space<vmem>>, vector<1x8x1x16xf32>
    %47 = vector.shape_cast %46 : vector<1x8x1x16xf32> to vector<8x16xf32>
    %48 = vector.shape_cast %45 : vector<8x16xf32> to vector<1x8x1x16xf32>
    tpu.vector_store %arg4[%c0_47, %c0_48, %c3, %c0_49], %48 {strides = array<i32>} : memref<1x8x16x16xf32, #tpu.memory_space<vmem>>, vector<1x8x1x16xf32>,
    %49 = vector.extract_strided_slice %32 {offsets = [0, 72], sizes = [8, 16], strides = [1, 1]} : vector<8x286xf32> to vector<8x16xf32>
    %c0_50 = arith.constant 0 : index
    %c0_51 = arith.constant 0 : index
    %c4_52 = arith.constant 4 : index
    %c0_53 = arith.constant 0 : index
    %50 = vector.load %arg4[%c0_50, %c0_51, %c4_52, %c0_53] : memref<1x8x16x16xf32, #tpu.memory_space<vmem>>, vector<1x8x1x16xf32>
    %51 = vector.shape_cast %50 : vector<1x8x1x16xf32> to vector<8x16xf32>
    %52 = vector.shape_cast %49 : vector<8x16xf32> to vector<1x8x1x16xf32>
    tpu.vector_store %arg4[%c0_50, %c0_51, %c4_52, %c0_53], %52 {strides = array<i32>} : memref<1x8x16x16xf32, #tpu.memory_space<vmem>>, vector<1x8x1x16xf32>,
    %53 = vector.extract_strided_slice %32 {offsets = [0, 90], sizes = [8, 16], strides = [1, 1]} : vector<8x286xf32> to vector<8x16xf32>
    %c0_54 = arith.constant 0 : index
    %c0_55 = arith.constant 0 : index
    %c5 = arith.constant 5 : index
    %c0_56 = arith.constant 0 : index
    %54 = vector.load %arg4[%c0_54, %c0_55, %c5, %c0_56] : memref<1x8x16x16xf32, #tpu.memory_space<vmem>>, vector<1x8x1x16xf32>
    %55 = vector.shape_cast %54 : vector<1x8x1x16xf32> to vector<8x16xf32>
    %56 = vector.shape_cast %53 : vector<8x16xf32> to vector<1x8x1x16xf32>
    tpu.vector_store %arg4[%c0_54, %c0_55, %c5, %c0_56], %56 {strides = array<i32>} : memref<1x8x16x16xf32, #tpu.memory_space<vmem>>, vector<1x8x1x16xf32>,
    %57 = vector.extract_strided_slice %32 {offsets = [0, 108], sizes = [8, 16], strides = [1, 1]} : vector<8x286xf32> to vector<8x16xf32>
    %c0_57 = arith.constant 0 : index
    %c0_58 = arith.constant 0 : index
    %c6 = arith.constant 6 : index
    %c0_59 = arith.constant 0 : index
    %58 = vector.load %arg4[%c0_57, %c0_58, %c6, %c0_59] : memref<1x8x16x16xf32, #tpu.memory_space<vmem>>, vector<1x8x1x16xf32>
    %59 = vector.shape_cast %58 : vector<1x8x1x16xf32> to vector<8x16xf32>
    %60 = vector.shape_cast %57 : vector<8x16xf32> to vector<1x8x1x16xf32>
    tpu.vector_store %arg4[%c0_57, %c0_58, %c6, %c0_59], %60 {strides = array<i32>} : memref<1x8x16x16xf32, #tpu.memory_space<vmem>>, vector<1x8x1x16xf32>,
    %61 = vector.extract_strided_slice %32 {offsets = [0, 126], sizes = [8, 16], strides = [1, 1]} : vector<8x286xf32> to vector<8x16xf32>
    %c0_60 = arith.constant 0 : index
    %c0_61 = arith.constant 0 : index
    %c7 = arith.constant 7 : index
    %c0_62 = arith.constant 0 : index
    %62 = vector.load %arg4[%c0_60, %c0_61, %c7, %c0_62] : memref<1x8x16x16xf32, #tpu.memory_space<vmem>>, vector<1x8x1x16xf32>
    %63 = vector.shape_cast %62 : vector<1x8x1x16xf32> to vector<8x16xf32>
    %64 = vector.shape_cast %61 : vector<8x16xf32> to vector<1x8x1x16xf32>
    tpu.vector_store %arg4[%c0_60, %c0_61, %c7, %c0_62], %64 {strides = array<i32>} : memref<1x8x16x16xf32, #tpu.memory_space<vmem>>, vector<1x8x1x16xf32>,
    %65 = vector.extract_strided_slice %32 {offsets = [0, 144], sizes = [8, 16], strides = [1, 1]} : vector<8x286xf32> to vector<8x16xf32>
    %c0_63 = arith.constant 0 : index
    %c0_64 = arith.constant 0 : index
    %c8_65 = arith.constant 8 : index
    %c0_66 = arith.constant 0 : index
    %66 = vector.load %arg4[%c0_63, %c0_64, %c8_65, %c0_66] : memref<1x8x16x16xf32, #tpu.memory_space<vmem>>, vector<1x8x1x16xf32>
    %67 = vector.shape_cast %66 : vector<1x8x1x16xf32> to vector<8x16xf32>
    %68 = vector.shape_cast %65 : vector<8x16xf32> to vector<1x8x1x16xf32>
    tpu.vector_store %arg4[%c0_63, %c0_64, %c8_65, %c0_66], %68 {strides = array<i32>} : memref<1x8x16x16xf32, #tpu.memory_space<vmem>>, vector<1x8x1x16xf32>,
    %69 = vector.extract_strided_slice %32 {offsets = [0, 162], sizes = [8, 16], strides = [1, 1]} : vector<8x286xf32> to vector<8x16xf32>
    %c0_67 = arith.constant 0 : index
    %c0_68 = arith.constant 0 : index
    %c9 = arith.constant 9 : index
    %c0_69 = arith.constant 0 : index
    %70 = vector.load %arg4[%c0_67, %c0_68, %c9, %c0_69] : memref<1x8x16x16xf32, #tpu.memory_space<vmem>>, vector<1x8x1x16xf32>
    %71 = vector.shape_cast %70 : vector<1x8x1x16xf32> to vector<8x16xf32>
    %72 = vector.shape_cast %69 : vector<8x16xf32> to vector<1x8x1x16xf32>
    tpu.vector_store %arg4[%c0_67, %c0_68, %c9, %c0_69], %72 {strides = array<i32>} : memref<1x8x16x16xf32, #tpu.memory_space<vmem>>, vector<1x8x1x16xf32>,
    %73 = vector.extract_strided_slice %32 {offsets = [0, 180], sizes = [8, 16], strides = [1, 1]} : vector<8x286xf32> to vector<8x16xf32>
    %c0_70 = arith.constant 0 : index
    %c0_71 = arith.constant 0 : index
    %c10 = arith.constant 10 : index
    %c0_72 = arith.constant 0 : index
    %74 = vector.load %arg4[%c0_70, %c0_71, %c10, %c0_72] : memref<1x8x16x16xf32, #tpu.memory_space<vmem>>, vector<1x8x1x16xf32>
    %75 = vector.shape_cast %74 : vector<1x8x1x16xf32> to vector<8x16xf32>
    %76 = vector.shape_cast %73 : vector<8x16xf32> to vector<1x8x1x16xf32>
    tpu.vector_store %arg4[%c0_70, %c0_71, %c10, %c0_72], %76 {strides = array<i32>} : memref<1x8x16x16xf32, #tpu.memory_space<vmem>>, vector<1x8x1x16xf32>,
    %77 = vector.extract_strided_slice %32 {offsets = [0, 198], sizes = [8, 16], strides = [1, 1]} : vector<8x286xf32> to vector<8x16xf32>
    %c0_73 = arith.constant 0 : index
    %c0_74 = arith.constant 0 : index
    %c11 = arith.constant 11 : index
    %c0_75 = arith.constant 0 : index
    %78 = vector.load %arg4[%c0_73, %c0_74, %c11, %c0_75] : memref<1x8x16x16xf32, #tpu.memory_space<vmem>>, vector<1x8x1x16xf32>
    %79 = vector.shape_cast %78 : vector<1x8x1x16xf32> to vector<8x16xf32>
    %80 = vector.shape_cast %77 : vector<8x16xf32> to vector<1x8x1x16xf32>
    tpu.vector_store %arg4[%c0_73, %c0_74, %c11, %c0_75], %80 {strides = array<i32>} : memref<1x8x16x16xf32, #tpu.memory_space<vmem>>, vector<1x8x1x16xf32>,
    %81 = vector.extract_strided_slice %32 {offsets = [0, 216], sizes = [8, 16], strides = [1, 1]} : vector<8x286xf32> to vector<8x16xf32>
    %c0_76 = arith.constant 0 : index
    %c0_77 = arith.constant 0 : index
    %c12_78 = arith.constant 12 : index
    %c0_79 = arith.constant 0 : index
    %82 = vector.load %arg4[%c0_76, %c0_77, %c12_78, %c0_79] : memref<1x8x16x16xf32, #tpu.memory_space<vmem>>, vector<1x8x1x16xf32>
    %83 = vector.shape_cast %82 : vector<1x8x1x16xf32> to vector<8x16xf32>
    %84 = vector.shape_cast %81 : vector<8x16xf32> to vector<1x8x1x16xf32>
    tpu.vector_store %arg4[%c0_76, %c0_77, %c12_78, %c0_79], %84 {strides = array<i32>} : memref<1x8x16x16xf32, #tpu.memory_space<vmem>>, vector<1x8x1x16xf32>,
    %85 = vector.extract_strided_slice %32 {offsets = [0, 234], sizes = [8, 16], strides = [1, 1]} : vector<8x286xf32> to vector<8x16xf32>
    %c0_80 = arith.constant 0 : index
    %c0_81 = arith.constant 0 : index
    %c13 = arith.constant 13 : index
    %c0_82 = arith.constant 0 : index
    %86 = vector.load %arg4[%c0_80, %c0_81, %c13, %c0_82] : memref<1x8x16x16xf32, #tpu.memory_space<vmem>>, vector<1x8x1x16xf32>
    %87 = vector.shape_cast %86 : vector<1x8x1x16xf32> to vector<8x16xf32>
    %88 = vector.shape_cast %85 : vector<8x16xf32> to vector<1x8x1x16xf32>
    tpu.vector_store %arg4[%c0_80, %c0_81, %c13, %c0_82], %88 {strides = array<i32>} : memref<1x8x16x16xf32, #tpu.memory_space<vmem>>, vector<1x8x1x16xf32>,
    %89 = vector.extract_strided_slice %32 {offsets = [0, 252], sizes = [8, 16], strides = [1, 1]} : vector<8x286xf32> to vector<8x16xf32>
    %c0_83 = arith.constant 0 : index
    %c0_84 = arith.constant 0 : index
    %c14 = arith.constant 14 : index
    %c0_85 = arith.constant 0 : index
    %90 = vector.load %arg4[%c0_83, %c0_84, %c14, %c0_85] : memref<1x8x16x16xf32, #tpu.memory_space<vmem>>, vector<1x8x1x16xf32>
    %91 = vector.shape_cast %90 : vector<1x8x1x16xf32> to vector<8x16xf32>
    %92 = vector.shape_cast %89 : vector<8x16xf32> to vector<1x8x1x16xf32>
    tpu.vector_store %arg4[%c0_83, %c0_84, %c14, %c0_85], %92 {strides = array<i32>} : memref<1x8x16x16xf32, #tpu.memory_space<vmem>>, vector<1x8x1x16xf32>,
    %93 = vector.extract_strided_slice %32 {offsets = [0, 270], sizes = [8, 16], strides = [1, 1]} : vector<8x286xf32> to vector<8x16xf32>
    %c0_86 = arith.constant 0 : index
    %c0_87 = arith.constant 0 : index
    %c15 = arith.constant 15 : index
    %c0_88 = arith.constant 0 : index
    %94 = vector.load %arg4[%c0_86, %c0_87, %c15, %c0_88] : memref<1x8x16x16xf32, #tpu.memory_space<vmem>>, vector<1x8x1x16xf32>
    %95 = vector.shape_cast %94 : vector<1x8x1x16xf32> to vector<8x16xf32>
    %96 = vector.shape_cast %93 : vector<8x16xf32> to vector<1x8x1x16xf32>
    tpu.vector_store %arg4[%c0_86, %c0_87, %c15, %c0_88], %96 {strides = array<i32>} : memref<1x8x16x16xf32, #tpu.memory_space<vmem>>, vector<1x8x1x16xf32>,
    return
  }
  func.func @transform_0(%arg0: i32) -> (i32, i32, i32) {
    %c0_i32 = arith.constant 0 : i32
    %c0_i32_0 = arith.constant 0 : i32
    %c0_i32_1 = arith.constant 0 : i32
    return %arg0, %c0_i32, %c0_i32_0 : i32, i32, i32
  }
  func.func @transform_1(%arg0: i32) -> (i32, i32) {
    %c0_i32 = arith.constant 0 : i32
    %c0_i32_0 = arith.constant 0 : i32
    %c0_i32_1 = arith.constant 0 : i32
    return %c0_i32, %c0_i32_0 : i32, i32
  }
  func.func @transform_2(%arg0: i32) -> (i32, i32) {
    %c0_i32 = arith.constant 0 : i32
    %c0_i32_0 = arith.constant 0 : i32
    %c0_i32_1 = arith.constant 0 : i32
    return %c0_i32, %c0_i32_0 : i32, i32
  }
  func.func @transform_3(%arg0: i32) -> (i32, i32, i32, i32) {
    %c0_i32 = arith.constant 0 : i32
    %c0_i32_0 = arith.constant 0 : i32
    %c0_i32_1 = arith.constant 0 : i32
    %c0_i32_2 = arith.constant 0 : i32
    return %arg0, %c0_i32, %c0_i32_0, %c0_i32_1 : i32, i32, i32, i32
  }
}

</mosaic_0001>

<llo_original>
// kernel: tpu_custom_call.1
$region0: #{tpu_custom_call.1}
  #allocation0 [shape = 'u32[]', space=smem, size = 0x4, offset = 0x4, fixed_abs, tag = 'smem constant byte address 0x4 - core index']
  #allocation1 [shape = 'u32[144,128]{1,0:T(1,128)}', space=vmem, size = 0x12000, scoped, tag = 'internal scratch']
  #allocation2 [shape = 'bf16[36,286]{1,0:T(8,128)(2,1)}', space=vmem, size = 0x7800, scoped, tag = 'scratch operand']
  %s0 = inlined_call_operand.hbm [shape: bf16[2,4,324], index: 0, kind: input, shape index: {}]
  %s1 = inlined_call_operand.vmem [shape: bf16[8,36], index: 1, kind: input, shape index: {}]
  %s2 = inlined_call_operand.vmem [shape: f32[8,1], index: 2, kind: input, shape index: {}]
  %s3 = inlined_call_operand.hbm [shape: f32[2,8,16,16], index: 3, kind: output, shape index: {}]
  %s4 = sld [smem:[#allocation0]]
  $region49: #{tpu_custom_call.1} parent=0
    _
  %s6 = ssub.s32 1, %s4
  %s7 = scalar_select 0, %s6, %s4
  $region1: #{tpu_custom_call.1} parent=0
    #allocation3 [shape = 'u8[6144]{0}', space=vmem, size = 0x1800, scoped, tag = 'input window, operand 0']
    #allocation4 [shape = 's32[2]{0}', space=sflag, size = 0x8, scoped, tag = 'scoped memory for tpu_custom_call.1']
    #allocation5 [shape = 's32[2]{0}', space=sflag, size = 0x8, scoped, tag = 'scoped memory for tpu_custom_call.1']
    #allocation6 [shape = 'u8[131072]{0}', space=vmem, size = 0x20000, scoped, tag = 'output window, operand 0']
    %8 = vsyncpa [#allocation4], 0
    %s9 = scalar_lea.sflag [#allocation4], 1
    %10 = vsyncpa %s9, 0
    %11 = vsyncpa [#allocation5], 0
    %s12 = scalar_lea.sflag [#allocation5], 1
    %13 = vsyncpa %s12, 0
    loop: start=0, step=1, limit=4
    $region2: #{tpu_custom_call.1} parent=1 // loop_pre_header
      _
    $region3: #{tpu_custom_call.1} parent=1 // loop_header
      %s15 = sphi 0, %s19
      %p16 = scmp.ge.s32.totalorder %s15, 4
      %s25 = sphi 0, %s27
      %s28 = sphi 0, %s25
      %s29 = sphi 0, %s28
      %s45 = sphi 0, %s29
      %s49 = sphi 0, %s49
      %s51 = sphi 0, %s49
      %s52 = sphi 0, %s51
      %s66 = sphi 0, %s52
      %s70 = sphi 0, %s70
      %s72 = sphi 0, %s70
      %s73 = sphi 0, %s72
      %s87 = sphi 0, %s73
      %s93 = sphi 0, %s95
      %s96 = sphi 0, %s93
      %s97 = sphi 0, %s96
      %s113 = sphi 0, %s97
    $region4: #{tpu_custom_call.1} parent=1 // loop_header_branch
      %18 = sbr.rel (%p16) target = $region8
    $region5: #{tpu_custom_call.1} parent=1 // loop_body
      %s20 = ssub.s32 %s15, 1
      %s21 = ssub.s32 %s15, 2
      %s22 = sadd.s32 %s15, 1
      %s23 = ssub.s32 %s15, %s22
      %p24 = scmp.eq.s32.totalorder %s23, 0
      %s26 = sadd.s32 %s25, 1
      %s27 = scalar_select %p24, %s25, %s26
      %p30 = pneg %p24
      %p31 = scmp.eq.s32.totalorder %s15, 1
      %p32 = por %p30, %p31
      %p33 = scmp.ne.s32.totalorder %s25, %s28
      %p34 = scmp.eq.s32.totalorder %s15, 0
      %p35 = por %p33, %p34
      %p36 = scmp.ne.s32.totalorder %s25, %s28
      %p37 = scmp.eq.s32.totalorder %s20, 1
      %p38 = por %p36, %p37
      %p39 = scmp.ne.s32.totalorder %s28, %s29
      %p40 = scmp.eq.s32.totalorder %s20, 0
      %p41 = por %p39, %p40
      %p42 = scmp.ne.s32.totalorder %s28, %s29
      %p43 = scmp.eq.s32.totalorder %s21, 1
      %p44 = por %p42, %p43
      %p46 = scmp.ne.s32.totalorder %s29, %s45
      %p47 = scmp.eq.s32.totalorder %s21, 0
      %p48 = por %p46, %p47
      %s50 = sadd.s32 %s49, 1
      %p53 = scmp.eq.s32.totalorder %s15, 1
      %p54 = scmp.ne.s32.totalorder %s49, %s51
      %p55 = scmp.eq.s32.totalorder %s15, 0
      %p56 = por %p54, %p55
      %p57 = scmp.ne.s32.totalorder %s49, %s51
      %p58 = scmp.eq.s32.totalorder %s20, 1
      %p59 = por %p57, %p58
      %p60 = scmp.ne.s32.totalorder %s51, %s52
      %p61 = scmp.eq.s32.totalorder %s20, 0
      %p62 = por %p60, %p61
      %p63 = scmp.ne.s32.totalorder %s51, %s52
      %p64 = scmp.eq.s32.totalorder %s21, 1
      %p65 = por %p63, %p64
      %p67 = scmp.ne.s32.totalorder %s52, %s66
      %p68 = scmp.eq.s32.totalorder %s21, 0
      %p69 = por %p67, %p68
      %s71 = sadd.s32 %s70, 1
      %p74 = scmp.eq.s32.totalorder %s15, 1
      %p75 = scmp.ne.s32.totalorder %s70, %s72
      %p76 = scmp.eq.s32.totalorder %s15, 0
      %p77 = por %p75, %p76
      %p78 = scmp.ne.s32.totalorder %s70, %s72
      %p79 = scmp.eq.s32.totalorder %s20, 1
      %p80 = por %p78, %p79
      %p81 = scmp.ne.s32.totalorder %s72, %s73
      %p82 = scmp.eq.s32.totalorder %s20, 0
      %p83 = por %p81, %p82
      %p84 = scmp.ne.s32.totalorder %s72, %s73
      %p85 = scmp.eq.s32.totalorder %s21, 1
      %p86 = por %p84, %p85
      %p88 = scmp.ne.s32.totalorder %s73, %s87
      %p89 = scmp.eq.s32.totalorder %s21, 0
      %p90 = por %p88, %p89
      %s91 = ssub.s32 %s15, %s22
      %p92 = scmp.eq.s32.totalorder %s91, 0
      %s94 = sadd.s32 %s93, 1
      %s95 = scalar_select %p92, %s93, %s94
      %p98 = pneg %p92
      %p99 = scmp.eq.s32.totalorder %s15, 1
      %p100 = por %p98, %p99
      %p101 = scmp.ne.s32.totalorder %s93, %s96
      %p102 = scmp.eq.s32.totalorder %s15, 0
      %p103 = por %p101, %p102
      %p104 = scmp.ne.s32.totalorder %s93, %s96
      %p105 = scmp.eq.s32.totalorder %s20, 1
      %p106 = por %p104, %p105
      %p107 = scmp.ne.s32.totalorder %s96, %s97
      %p108 = scmp.eq.s32.totalorder %s20, 0
      %p109 = por %p107, %p108
      %p110 = scmp.ne.s32.totalorder %s96, %s97
      %p111 = scmp.eq.s32.totalorder %s21, 1
      %p112 = por %p110, %p111
      %p114 = scmp.ne.s32.totalorder %s97, %s113
      %p115 = scmp.eq.s32.totalorder %s21, 0
      %p116 = por %p114, %p115
      %p117 = scmp.le.s32.totalorder 1, %s15
      %p118 = scmp.lt.s32.totalorder %s15, 3
      %p119 = pnand %p117, %p118
      %p120 = pneg %p119
      // Predicated region
      $region9: #{tpu_custom_call.1} parent=5 // pred_check
        _
      $region10: #{tpu_custom_call.1} parent=5 // pred_check_branch
        %122 = sbr.rel (%p119) target = $region12
      $region11: #{tpu_custom_call.1} parent=5 // pred_region
        %s123 = ssub.s32 %s15, 1
        // Predicated region
        $region13: #{tpu_custom_call.1} parent=11 // pred_check
          %p124 = pneg %p62
        $region14: #{tpu_custom_call.1} parent=11 // pred_check_branch
          %126 = sbr.rel (%p124) target = $region16
        $region15: #{tpu_custom_call.1} parent=11 // pred_region
          _
        $region16: #{tpu_custom_call.1} parent=11 // pred_fallthru
          _
        // Predicated region
        $region17: #{tpu_custom_call.1} parent=11 // pred_check
          %p127 = pneg %p83
        $region18: #{tpu_custom_call.1} parent=11 // pred_check_branch
          %129 = sbr.rel (%p127) target = $region20
        $region19: #{tpu_custom_call.1} parent=11 // pred_region
          _
        $region20: #{tpu_custom_call.1} parent=11 // pred_fallthru
          _
      $region12: #{tpu_custom_call.1} parent=5 // pred_fallthru
        _
      %p130 = scmp.lt.s32.totalorder %s15, 2
      // Predicated region
      $region21: #{tpu_custom_call.1} parent=5 // pred_check
        %p131 = pneg %p130
      $region22: #{tpu_custom_call.1} parent=5 // pred_check_branch
        %133 = sbr.rel (%p131) target = $region24
      $region23: #{tpu_custom_call.1} parent=5 // pred_region
        // Predicated region
        $region25: #{tpu_custom_call.1} parent=23 // pred_check
          %p134 = pneg %p35
        $region26: #{tpu_custom_call.1} parent=23 // pred_check_branch
          %136 = sbr.rel (%p134) target = $region28
        $region27: #{tpu_custom_call.1} parent=23 // pred_region
          %s137 = sand.u32 %s25, 1
          %s138 = scalar_lea.sflag [#allocation4], %s137
          %s139 = sand.u32 %s25, 1
          %s140 = smul.addr %s139, 6
          %s141 = scalar_lea.vmem [#allocation3], %s140
          %s143 = ssub.s32 96, 96
          %144 = vsyncadd %s138, %s143
          %s145 = smul.addr %s15, 3
          %s146 = smul.addr %s145, 32
          %s147 = scalar_lea.hbm %s0, %s146
          %s149 = sshll.u32 %s141, 4
          %s150 = int_to_ptr.vmem [resolvable:$true] %s149
          %152 = dma.hbm_to_vmem [thread:$0]  %s147, 96, %s150, %s138
        $region28: #{tpu_custom_call.1} parent=23 // pred_fallthru
          _
      $region24: #{tpu_custom_call.1} parent=5 // pred_fallthru
        _
      %p153 = scmp.le.s32.totalorder 1, %s15
      %p154 = scmp.lt.s32.totalorder %s15, 3
      %p155 = pnand %p153, %p154
      %p156 = pneg %p155
      // Predicated region
      $region29: #{tpu_custom_call.1} parent=5 // pred_check
        _
      $region30: #{tpu_custom_call.1} parent=5 // pred_check_branch
        %158 = sbr.rel (%p155) target = $region32
      $region31: #{tpu_custom_call.1} parent=5 // pred_region
        %s159 = ssub.s32 %s15, 1
        %s160 = sand.u32 %s28, 1
        %s161 = scalar_lea.sflag [#allocation4], %s160
        %s162 = sand.u32 %s28, 1
        %s163 = smul.addr %s162, 6
        %s164 = scalar_lea.vmem [#allocation3], %s163
        // Predicated region
        $region33: #{tpu_custom_call.1} parent=31 // pred_check
          %p165 = pneg %p41
        $region34: #{tpu_custom_call.1} parent=31 // pred_check_branch
          %167 = sbr.rel (%p165) target = $region36
        $region35: #{tpu_custom_call.1} parent=31 // pred_region
          %168 = dma.done %s161, 96
        $region36: #{tpu_custom_call.1} parent=31 // pred_fallthru
          _
        %s169 = sand.u32 %s28, 1
        %s170 = scalar_lea.sflag [#allocation4], %s169
        %s171 = sand.u32 %s28, 1
        %s172 = smul.addr %s171, 6
        %s173 = scalar_lea.vmem [#allocation3], %s172
        %p174 = pneg %p41
        %p175 = pneg %p38
        %p176 = pneg %p62
        %p177 = pneg %p59
        %p178 = pneg %p83
        %p179 = pneg %p80
        %p180 = pneg %p109
        %p181 = pneg %p106
        %s182 = sand.u32 %s96, 1
        %s183 = scalar_lea.sflag [#allocation5], %s182
        %s184 = sand.u32 %s96, 1
        %s185 = smul.addr %s184, 128
        %s186 = scalar_lea.vmem [#allocation6], %s185
        %v188 = vld [vmem:[%s164] sm:$0x3f]
        %v190 = vcombine.high %v188, %v188
        %v192 = vunpack.c.l.s4 1983009808
        %v193 = vunpack.c.0.s8 %v192
        %v194 = vlaneseq
        %v195 = vshrl.u32 %v194, 7
        %v196 = vsub.s32 %v193, %v195
        %v197 = vrot.slane %v188, %v196
        %v199 = vunpack.c.l.s4 1983009808
        %v200 = vunpack.c.0.s8 %v199
        %v201 = vlaneseq
        %v202 = vshrl.u32 %v201, 7
        %v203 = vsub.s32 %v200, %v202
        %v204 = vrot.slane %v190, %v203
        %207 = vst [vmem:[#allocation2] sm:$0x33] %v197
        %vm208 = vcmask 238592
        %209 = vst.msk [vmem:[#allocation2 + $0x8] sm:$0x3] %vm208, %v204
        %v210 = vld [vmem:[%s164] sm:$0x3f]
        %v212 = vcombine.low %v210, %v210
        %v214 = vunpack.c.l.s4 1983009808
        %v215 = vunpack.c.0.s8 %v214
        %v216 = vlaneseq
        %v217 = vshrl.u32 %v216, 7
        %v218 = vsub.s32 %v215, %v217
        %v219 = vrot.slane %v212, %v218
        %v221 = vunpack.c.l.s4 1983009808
        %v222 = vunpack.c.0.s8 %v221
        %v223 = vlaneseq
        %v224 = vshrl.u32 %v223, 7
        %v225 = vsub.s32 %v222, %v224
        %v226 = vrot.slane %v210, %v225
        %227 = vrot.lane.b32.xlu0 %v219, 127
        %v228 = vpop.permute.xlu0 %227
        %229 = vrot.lane.b32.xlu0 %v226, 127
        %v230 = vpop.permute.xlu0 %229
        %v231 = vrot.slane %v228, 4
        %v232 = vrot.slane %v230, 4
        %vm233 = vcmask 1043456
        %v234 = vsel %vm233, %v231, %v232
        %vm235 = vcmask 1039360
        %v236 = vsel %vm235, %v228, %v234
        %239 = vst [vmem:[#allocation2] sm:$0xcc] %v236
        %vm240 = vcmask 240642
        %241 = vst.msk [vmem:[#allocation2 + $0x8] sm:$0xc] %vm240, %v230
        %v242 = vld [vmem:[%s164] sm:$0x3f]
        %v244 = vcombine.high %v242, %v242
        %v246 = vunpack.c.l.s4 1983009808
        %v247 = vunpack.c.0.s8 %v246
        %v248 = vlaneseq
        %v249 = vshrl.u32 %v248, 7
        %v250 = vsub.s32 %v247, %v249
        %v251 = vrot.slane %v242, %v250
        %v253 = vunpack.c.l.s4 1983009808
        %v254 = vunpack.c.0.s8 %v253
        %v255 = vlaneseq
        %v256 = vshrl.u32 %v255, 7
        %v257 = vsub.s32 %v254, %v256
        %v258 = vrot.slane %v244, %v257
        %259 = vrot.lane.b32.xlu0 %v251, 126
        %v260 = vpop.permute.xlu0 %259
        %261 = vrot.lane.b32.xlu0 %v258, 126
        %v262 = vpop.permute.xlu0 %261
        %v263 = vrot.slane %v260, 4
        %v264 = vrot.slane %v262, 4
        %v265 = vsel %vm233, %v263, %v264
        %vm266 = vcmask 1031168
        %v267 = vsel %vm266, %v260, %v265
        %270 = vst [vmem:[#allocation2 + $0xc] sm:$0x33] %v267
        %271 = vst.msk [vmem:[#allocation2 + $0x14] sm:$0x3] %vm208, %v262
        %v272 = vld [vmem:[%s164] sm:$0x3f]
        %v274 = vcombine.low %v272, %v272
        %v276 = vunpack.c.l.s4 1983009808
        %v277 = vunpack.c.0.s8 %v276
        %v278 = vlaneseq
        %v279 = vshrl.u32 %v278, 7
        %v280 = vsub.s32 %v277, %v279
        %v281 = vrot.slane %v274, %v280
        %v283 = vunpack.c.l.s4 1983009808
        %v284 = vunpack.c.0.s8 %v283
        %v285 = vlaneseq
        %v286 = vshrl.u32 %v285, 7
        %v287 = vsub.s32 %v284, %v286
        %v288 = vrot.slane %v272, %v287
        %289 = vrot.lane.b32.xlu0 %v281, 110
        %v290 = vpop.permute.xlu0 %289
        %291 = vrot.lane.b32.xlu0 %v288, 110
        %v292 = vpop.permute.xlu0 %291
        %v293 = vrot.slane %v290, 4
        %v294 = vrot.slane %v292, 4
        %v295 = vsel %vm233, %v293, %v294
        %vm296 = vcmask 900096
        %v297 = vsel %vm296, %v290, %v295
        %300 = vst [vmem:[#allocation2 + $0xc] sm:$0xcc] %v297
        %301 = vst.msk [vmem:[#allocation2 + $0x14] sm:$0xc] %vm240, %v292
        %v302 = vld [vmem:[%s164] sm:$0x3f]
        %v304 = vcombine.high %v302, %v302
        %v306 = vunpack.c.l.s4 1983009808
        %v307 = vunpack.c.0.s8 %v306
        %v308 = vlaneseq
        %v309 = vshrl.u32 %v308, 7
        %v310 = vsub.s32 %v307, %v309
        %v311 = vrot.slane %v302, %v310
        %v313 = vunpack.c.l.s4 1983009808
        %v314 = vunpack.c.0.s8 %v313
        %v315 = vlaneseq
        %v316 = vshrl.u32 %v315, 7
        %v317 = vsub.s32 %v314, %v316
        %v318 = vrot.slane %v304, %v317
        %319 = vrot.lane.b32.xlu0 %v311, 109
        %v320 = vpop.permute.xlu0 %319
        %321 = vrot.lane.b32.xlu0 %v318, 109
        %v322 = vpop.permute.xlu0 %321
        %v323 = vrot.slane %v320, 4
        %v324 = vrot.slane %v322, 4
        %v325 = vsel %vm233, %v323, %v324
        %vm326 = vcmask 891904
        %v327 = vsel %vm326, %v320, %v325
        %330 = vst [vmem:[#allocation2 + $0x18] sm:$0x33] %v327
        %331 = vst.msk [vmem:[#allocation2 + $0x20] sm:$0x3] %vm208, %v322
        %v332 = vld [vmem:[%s164] sm:$0x3f]
        %v334 = vcombine.low %v332, %v332
        %v336 = vunpack.c.l.s4 1983009808
        %v337 = vunpack.c.0.s8 %v336
        %v338 = vlaneseq
        %v339 = vshrl.u32 %v338, 7
        %v340 = vsub.s32 %v337, %v339
        %v341 = vrot.slane %v334, %v340
        %v343 = vunpack.c.l.s4 1983009808
        %v344 = vunpack.c.0.s8 %v343
        %v345 = vlaneseq
        %v346 = vshrl.u32 %v345, 7
        %v347 = vsub.s32 %v344, %v346
        %v348 = vrot.slane %v332, %v347
        %349 = vrot.lane.b32.xlu0 %v341, 108
        %v350 = vpop.permute.xlu0 %349
        %351 = vrot.lane.b32.xlu0 %v348, 108
        %v352 = vpop.permute.xlu0 %351
        %v353 = vrot.slane %v350, 4
        %v354 = vrot.slane %v352, 4
        %v355 = vsel %vm233, %v353, %v354
        %vm356 = vcmask 883712
        %v357 = vsel %vm356, %v350, %v355
        %360 = vst [vmem:[#allocation2 + $0x18] sm:$0xcc] %v357
        %361 = vst.msk [vmem:[#allocation2 + $0x20] sm:$0xc] %vm240, %v352
        %v362 = vld [vmem:[%s164] sm:$0x3f]
        %v364 = vcombine.high %v362, %v362
        %v366 = vunpack.c.l.s4 1983009808
        %v367 = vunpack.c.0.s8 %v366
        %v368 = vlaneseq
        %v369 = vshrl.u32 %v368, 7
        %v370 = vsub.s32 %v367, %v369
        %v371 = vrot.slane %v362, %v370
        %v373 = vunpack.c.l.s4 1983009808
        %v374 = vunpack.c.0.s8 %v373
        %v375 = vlaneseq
        %v376 = vshrl.u32 %v375, 7
        %v377 = vsub.s32 %v374, %v376
        %v378 = vrot.slane %v364, %v377
        %379 = vrot.lane.b32.xlu0 %v371, 92
        %v380 = vpop.permute.xlu0 %379
        %381 = vrot.lane.b32.xlu0 %v378, 92
        %v382 = vpop.permute.xlu0 %381
        %v383 = vrot.slane %v380, 4
        %v384 = vrot.slane %v382, 4
        %v385 = vsel %vm233, %v383, %v384
        %vm386 = vcmask 752640
        %v387 = vsel %vm386, %v380, %v385
        %390 = vst [vmem:[#allocation2 + $0x24] sm:$0x33] %v387
        %391 = vst.msk [vmem:[#allocation2 + $0x2c] sm:$0x3] %vm208, %v382
        %v392 = vld [vmem:[%s164] sm:$0x3f]
        %v394 = vcombine.low %v392, %v392
        %v396 = vunpack.c.l.s4 1983009808
        %v397 = vunpack.c.0.s8 %v396
        %v398 = vlaneseq
        %v399 = vshrl.u32 %v398, 7
        %v400 = vsub.s32 %v397, %v399
        %v401 = vrot.slane %v394, %v400
        %v403 = vunpack.c.l.s4 1983009808
        %v404 = vunpack.c.0.s8 %v403
        %v405 = vlaneseq
        %v406 = vshrl.u32 %v405, 7
        %v407 = vsub.s32 %v404, %v406
        %v408 = vrot.slane %v392, %v407
        %409 = vrot.lane.b32.xlu0 %v401, 91
        %v410 = vpop.permute.xlu0 %409
        %411 = vrot.lane.b32.xlu0 %v408, 91
        %v412 = vpop.permute.xlu0 %411
        %v413 = vrot.slane %v410, 4
        %v414 = vrot.slane %v412, 4
        %v415 = vsel %vm233, %v413, %v414
        %vm416 = vcmask 744448
        %v417 = vsel %vm416, %v410, %v415
        %420 = vst [vmem:[#allocation2 + $0x24] sm:$0xcc] %v417
        %421 = vst.msk [vmem:[#allocation2 + $0x2c] sm:$0xc] %vm240, %v412
        %v422 = vld [vmem:[%s164] sm:$0x3f]
        %v424 = vcombine.high %v422, %v422
        %v426 = vunpack.c.l.s4 1983009808
        %v427 = vunpack.c.0.s8 %v426
        %v428 = vlaneseq
        %v429 = vshrl.u32 %v428, 7
        %v430 = vsub.s32 %v427, %v429
        %v431 = vrot.slane %v422, %v430
        %v433 = vunpack.c.l.s4 1983009808
        %v434 = vunpack.c.0.s8 %v433
        %v435 = vlaneseq
        %v436 = vshrl.u32 %v435, 7
        %v437 = vsub.s32 %v434, %v436
        %v438 = vrot.slane %v424, %v437
        %439 = vrot.lane.b32.xlu0 %v431, 90
        %v440 = vpop.permute.xlu0 %439
        %441 = vrot.lane.b32.xlu0 %v438, 90
        %v442 = vpop.permute.xlu0 %441
        %v443 = vrot.slane %v440, 4
        %v444 = vrot.slane %v442, 4
        %v445 = vsel %vm233, %v443, %v444
        %vm446 = vcmask 736256
        %v447 = vsel %vm446, %v440, %v445
        %450 = vst [vmem:[#allocation2 + $0x30] sm:$0x33] %v447
        %451 = vst.msk [vmem:[#allocation2 + $0x38] sm:$0x3] %vm208, %v442
        %v452 = vld [vmem:[%s1] sm:$0xf]
        %v453 = vld [vmem:[#allocation2] sm:$0xff]
        %v454 = vld [vmem:[#allocation2 + $0x8] sm:$0xf]
        %v455 = vld [vmem:[#allocation2 + $0xc] sm:$0xff]
        %v456 = vld [vmem:[#allocation2 + $0x14] sm:$0xf]
        %v457 = vld [vmem:[#allocation2 + $0x18] sm:$0xff]
        %v458 = vld [vmem:[#allocation2 + $0x20] sm:$0xf]
        %v459 = vld [vmem:[#allocation2 + $0x24] sm:$0xff]
        %v460 = vld [vmem:[#allocation2 + $0x2c] sm:$0xf]
        %v461 = vld [vmem:[#allocation2 + $0x30] sm:$0x33]
        %v462 = vld [vmem:[#allocation2 + $0x38] sm:$0x3]
        %v463 = vld [vmem:[%s2] sm:$0xff]
        %465 = vset.pattern.permute.xlu0 0
        %466 = vperm.xlu0 %465, %v463
        %v467 = vpop.permute.xlu0 %466
        %v479 = vunpack.c.l.b16 %v453
        %v480 = vunpack.c.h.b16 %v453
        %v481 = vunpack.c.l.b16 %v454
        %v482 = vunpack.c.l.b16 %v455
        %v483 = vunpack.c.h.b16 %v455
        %v484 = vunpack.c.l.b16 %v456
        %v485 = vunpack.c.l.b16 %v457
        %v486 = vunpack.c.h.b16 %v457
        %v487 = vunpack.c.l.b16 %v458
        %v488 = vunpack.c.l.b16 %v459
        %v489 = vunpack.c.h.b16 %v459
        %v490 = vunpack.c.l.b16 %v460
        %v491 = vunpack.c.l.b16 %v461
        %v492 = vunpack.c.h.b16 %v461
        %v493 = vunpack.c.l.b16 %v462
        %v494 = vpack.c.b16 %v482, %v479
        %v495 = vpack.c.b16 %v483, %v480
        %v496 = vpack.c.b16 %v484, %v481
        %v497 = vpack.c.b16 %v488, %v485
        %v498 = vpack.c.b16 %v489, %v486
        %v499 = vpack.c.b16 %v490, %v487
        %v500 = vpack.c.b16 %v491, %v491
        %v501 = vpack.c.b16 %v492, %v492
        %v502 = vpack.c.b16 %v493, %v493
        %vm509 = vcmask 293888
        %v511 = vsel %vm509, %v452, 0
        %vm513 = vcmask 1041408
        %v515 = vsel %vm513, %v500, 0
        %v518 = vsel %vm513, %v501, 0
        %v521 = vsel %vm513, %v502, 0
        %523 = vmatprep.subr.bf16.mxu0 0
        %524 = vmatpush1.bf16.msra.mxu0 0
        %525 = vmatprep.subr.bf16.mxu0 0
        %526 = vmatpush1.bf16.msra.mxu0 0
        %527 = vmatprep.subr.bf16.mxu0 0
        %528 = vmatpush1.bf16.msra.mxu0 0
        %529 = vmatprep.subr.bf16.mxu0 0
        %530 = vmatpush1.bf16.msra.mxu0 0
        %531 = vmatprep.subr.bf16.mxu0 0
        %532 = vmatpush1.bf16.msra.mxu0 0
        %533 = vmatprep.subr.bf16.mxu0 %v518
        %534 = vmatpush1.bf16.msra.mxu0 %v515
        %535 = vmatprep.subr.bf16.mxu0 %v498
        %536 = vmatpush1.bf16.msra.mxu0 %v497
        %537 = vmatprep.subr.bf16.mxu0 %v495
        %538 = vmatpush1.bf16.msra.mxu0 %v494
        %539 = vmatprep.subr.bf16.mxu0 0
        %540 = vmatpush2.bf16.msra.mxu0 0
        %541 = vmatprep.subr.bf16.mxu0 0
        %542 = vmatpush2.bf16.msra.mxu0 0
        %543 = vmatprep.subr.bf16.mxu0 0
        %544 = vmatpush2.bf16.msra.mxu0 0
        %545 = vmatprep.subr.bf16.mxu0 0
        %546 = vmatpush2.bf16.msra.mxu0 0
        %547 = vmatprep.subr.bf16.mxu0 0
        %548 = vmatpush2.bf16.msra.mxu0 0
        %549 = vmatprep.subr.bf16.mxu0 0
        %550 = vmatpush2.bf16.msra.mxu0 0
        %551 = vmatprep.subr.bf16.mxu0 0
        %552 = vmatpush2.bf16.msra.mxu0 0
        %553 = vmatprep.subr.bf16.mxu0 0
        %554 = vmatpush2.bf16.msra.mxu0 0
        %555 = vmatprep.mubr.bf16.mxu0 0
        %556 = vmatmul.mubr.bf16.gmra.mxu0 %v511
        %v557 = vpop.f32.mrf.mxu0
        %v558 = vadd.f32 %v467, %v557
        %v559 = vpop.f32.mrf.mxu0
        %v560 = vadd.f32 %v467, %v559
        %v561 = vpop.f32.mrf.mxu0
        %v562 = vpop.f32.mrf.mxu0
        %563 = vdwg.mxu0
        %564 = vmatprep.subr.bf16.mxu0 0
        %565 = vmatpush1.bf16.msra.mxu0 0
        %566 = vmatprep.subr.bf16.mxu0 0
        %567 = vmatpush1.bf16.msra.mxu0 0
        %568 = vmatprep.subr.bf16.mxu0 0
        %569 = vmatpush1.bf16.msra.mxu0 0
        %570 = vmatprep.subr.bf16.mxu0 0
        %571 = vmatpush1.bf16.msra.mxu0 0
        %572 = vmatprep.subr.bf16.mxu0 0
        %573 = vmatpush1.bf16.msra.mxu0 0
        %574 = vmatprep.subr.bf16.mxu0 0
        %575 = vmatpush1.bf16.msra.mxu0 %v521
        %576 = vmatprep.subr.bf16.mxu0 0
        %577 = vmatpush1.bf16.msra.mxu0 %v499
        %578 = vmatprep.subr.bf16.mxu0 0
        %579 = vmatpush1.bf16.msra.mxu0 %v496
        %580 = vmatprep.subr.bf16.mxu0 0
        %581 = vmatpush2.bf16.msra.mxu0 0
        %582 = vmatprep.subr.bf16.mxu0 0
        %583 = vmatpush2.bf16.msra.mxu0 0
        %584 = vmatprep.subr.bf16.mxu0 0
        %585 = vmatpush2.bf16.msra.mxu0 0
        %586 = vmatprep.subr.bf16.mxu0 0
        %587 = vmatpush2.bf16.msra.mxu0 0
        %588 = vmatprep.subr.bf16.mxu0 0
        %589 = vmatpush2.bf16.msra.mxu0 0
        %590 = vmatprep.subr.bf16.mxu0 0
        %591 = vmatpush2.bf16.msra.mxu0 0
        %592 = vmatprep.subr.bf16.mxu0 0
        %593 = vmatpush2.bf16.msra.mxu0 0
        %594 = vmatprep.subr.bf16.mxu0 0
        %595 = vmatpush2.bf16.msra.mxu0 0
        %596 = vmatprep.mubr.bf16.mxu0 0
        %597 = vmatmul.mubr.bf16.gmra.mxu0 %v511
        %v598 = vpop.f32.mrf.mxu0
        %v599 = vadd.f32 %v467, %v598
        %v600 = vpop.f32.mrf.mxu0
        %v601 = vpop.f32.mrf.mxu0
        %v602 = vpop.f32.mrf.mxu0
        %603 = vdwg.mxu0
        %v605 = vcombine.high %v558, %v558
        %v607 = vunpack.c.l.s4 1966171168
        %v608 = vunpack.c.0.s8 %v607
        %v609 = vlaneseq
        %v610 = vshrl.u32 %v609, 7
        %v611 = vsub.s32 %v608, %v610
        %v612 = vrot.slane %v558, %v611
        %v614 = vunpack.c.l.s4 1966171168
        %v615 = vunpack.c.0.s8 %v614
        %v616 = vlaneseq
        %v617 = vshrl.u32 %v616, 7
        %v618 = vsub.s32 %v615, %v617
        %v619 = vrot.slane %v605, %v618
        %v620 = vcombine.high %v612, %v612
        %v621 = vcombine.high %v619, %v619
        %v623 = vunpack.c.l.s4 1966171168
        %v624 = vunpack.c.0.s8 %v623
        %v625 = vlaneseq
        %v626 = vshrl.u32 %v625, 7
        %v627 = vsub.s32 %v624, %v626
        %v628 = vrot.slane %v612, %v627
        %v630 = vunpack.c.l.s4 1966171168
        %v631 = vunpack.c.0.s8 %v630
        %v632 = vlaneseq
        %v633 = vshrl.u32 %v632, 7
        %v634 = vsub.s32 %v631, %v633
        %v635 = vrot.slane %v619, %v634
        %v637 = vunpack.c.l.s4 1966171168
        %v638 = vunpack.c.0.s8 %v637
        %v639 = vlaneseq
        %v640 = vshrl.u32 %v639, 7
        %v641 = vsub.s32 %v638, %v640
        %v642 = vrot.slane %v620, %v641
        %v644 = vunpack.c.l.s4 1966171168
        %v645 = vunpack.c.0.s8 %v644
        %v646 = vlaneseq
        %v647 = vshrl.u32 %v646, 7
        %v648 = vsub.s32 %v645, %v647
        %v649 = vrot.slane %v621, %v648
        %v650 = vcombine.high %v628, %v628
        %v651 = vcombine.high %v635, %v635
        %v652 = vcombine.high %v642, %v642
        %v653 = vcombine.high %v649, %v649
        %vm662 = vcmask 122880
        %663 = vst.msk [vmem:[%s186] sm:$0x1] %vm662, %v628
        %664 = vst.msk [vmem:[%s186 + $0x10] sm:$0x1] %vm662, %v642
        %665 = vst.msk [vmem:[%s186 + $0x20] sm:$0x1] %vm662, %v650
        %666 = vst.msk [vmem:[%s186 + $0x30] sm:$0x1] %vm662, %v652
        %667 = vst.msk [vmem:[%s186 + $0x40] sm:$0x1] %vm662, %v635
        %668 = vst.msk [vmem:[%s186 + $0x50] sm:$0x1] %vm662, %v649
        %669 = vst.msk [vmem:[%s186 + $0x60] sm:$0x1] %vm662, %v651
        %670 = vst.msk [vmem:[%s186 + $0x70] sm:$0x1] %vm662, %v653
        %v671 = vlaneseq
        %v672 = vshrl.u32 %v671, 7
        %v673 = vsub.s32 0, %v672
        %v674 = vrot.slane %v628, %v673
        %v675 = vlaneseq
        %v676 = vshrl.u32 %v675, 7
        %v677 = vsub.s32 0, %v676
        %v678 = vrot.slane %v642, %v677
        %v679 = vlaneseq
        %v680 = vshrl.u32 %v679, 7
        %v681 = vsub.s32 0, %v680
        %v682 = vrot.slane %v650, %v681
        %v683 = vlaneseq
        %v684 = vshrl.u32 %v683, 7
        %v685 = vsub.s32 0, %v684
        %v686 = vrot.slane %v652, %v685
        %v687 = vlaneseq
        %v688 = vshrl.u32 %v687, 7
        %v689 = vsub.s32 0, %v688
        %v690 = vrot.slane %v635, %v689
        %v691 = vlaneseq
        %v692 = vshrl.u32 %v691, 7
        %v693 = vsub.s32 0, %v692
        %v694 = vrot.slane %v649, %v693
        %v695 = vlaneseq
        %v696 = vshrl.u32 %v695, 7
        %v697 = vsub.s32 0, %v696
        %v698 = vrot.slane %v651, %v697
        %v699 = vlaneseq
        %v700 = vshrl.u32 %v699, 7
        %v701 = vsub.s32 0, %v700
        %v702 = vrot.slane %v653, %v701
        %703 = vrot.lane.b32.xlu0 %v674, 110
        %v704 = vpop.permute.xlu0 %703
        %705 = vrot.lane.b32.xlu0 %v678, 110
        %v706 = vpop.permute.xlu0 %705
        %707 = vrot.lane.b32.xlu0 %v682, 110
        %v708 = vpop.permute.xlu0 %707
        %709 = vrot.lane.b32.xlu0 %v686, 110
        %v710 = vpop.permute.xlu0 %709
        %711 = vrot.lane.b32.xlu0 %v690, 110
        %v712 = vpop.permute.xlu0 %711
        %713 = vrot.lane.b32.xlu0 %v694, 110
        %v714 = vpop.permute.xlu0 %713
        %715 = vrot.lane.b32.xlu0 %v698, 110
        %v716 = vpop.permute.xlu0 %715
        %717 = vrot.lane.b32.xlu0 %v702, 110
        %v718 = vpop.permute.xlu0 %717
        %727 = vst.msk [vmem:[%s186 + $0x1] sm:$0x1] %vm662, %v704
        %728 = vst.msk [vmem:[%s186 + $0x11] sm:$0x1] %vm662, %v706
        %729 = vst.msk [vmem:[%s186 + $0x21] sm:$0x1] %vm662, %v708
        %730 = vst.msk [vmem:[%s186 + $0x31] sm:$0x1] %vm662, %v710
        %731 = vst.msk [vmem:[%s186 + $0x41] sm:$0x1] %vm662, %v712
        %732 = vst.msk [vmem:[%s186 + $0x51] sm:$0x1] %vm662, %v714
        %733 = vst.msk [vmem:[%s186 + $0x61] sm:$0x1] %vm662, %v716
        %734 = vst.msk [vmem:[%s186 + $0x71] sm:$0x1] %vm662, %v718
        %735 = vrot.lane.b32.xlu0 %v674, 92
        %v736 = vpop.permute.xlu0 %735
        %737 = vrot.lane.b32.xlu0 %v678, 92
        %v738 = vpop.permute.xlu0 %737
        %739 = vrot.lane.b32.xlu0 %v682, 92
        %v740 = vpop.permute.xlu0 %739
        %741 = vrot.lane.b32.xlu0 %v686, 92
        %v742 = vpop.permute.xlu0 %741
        %743 = vrot.lane.b32.xlu0 %v690, 92
        %v744 = vpop.permute.xlu0 %743
        %745 = vrot.lane.b32.xlu0 %v694, 92
        %v746 = vpop.permute.xlu0 %745
        %747 = vrot.lane.b32.xlu0 %v698, 92
        %v748 = vpop.permute.xlu0 %747
        %749 = vrot.lane.b32.xlu0 %v702, 92
        %v750 = vpop.permute.xlu0 %749
        %759 = vst.msk [vmem:[%s186 + $0x2] sm:$0x1] %vm662, %v736
        %760 = vst.msk [vmem:[%s186 + $0x12] sm:$0x1] %vm662, %v738
        %761 = vst.msk [vmem:[%s186 + $0x22] sm:$0x1] %vm662, %v740
        %762 = vst.msk [vmem:[%s186 + $0x32] sm:$0x1] %vm662, %v742
        %763 = vst.msk [vmem:[%s186 + $0x42] sm:$0x1] %vm662, %v744
        %764 = vst.msk [vmem:[%s186 + $0x52] sm:$0x1] %vm662, %v746
        %765 = vst.msk [vmem:[%s186 + $0x62] sm:$0x1] %vm662, %v748
        %766 = vst.msk [vmem:[%s186 + $0x72] sm:$0x1] %vm662, %v750
        %767 = vrot.lane.b32.xlu0 %v674, 74
        %v768 = vpop.permute.xlu0 %767
        %769 = vrot.lane.b32.xlu0 %v678, 74
        %v770 = vpop.permute.xlu0 %769
        %771 = vrot.lane.b32.xlu0 %v682, 74
        %v772 = vpop.permute.xlu0 %771
        %773 = vrot.lane.b32.xlu0 %v686, 74
        %v774 = vpop.permute.xlu0 %773
        %775 = vrot.lane.b32.xlu0 %v690, 74
        %v776 = vpop.permute.xlu0 %775
        %777 = vrot.lane.b32.xlu0 %v694, 74
        %v778 = vpop.permute.xlu0 %777
        %779 = vrot.lane.b32.xlu0 %v698, 74
        %v780 = vpop.permute.xlu0 %779
        %781 = vrot.lane.b32.xlu0 %v702, 74
        %v782 = vpop.permute.xlu0 %781
        %791 = vst.msk [vmem:[%s186 + $0x3] sm:$0x1] %vm662, %v768
        %792 = vst.msk [vmem:[%s186 + $0x13] sm:$0x1] %vm662, %v770
        %793 = vst.msk [vmem:[%s186 + $0x23] sm:$0x1] %vm662, %v772
        %794 = vst.msk [vmem:[%s186 + $0x33] sm:$0x1] %vm662, %v774
        %795 = vst.msk [vmem:[%s186 + $0x43] sm:$0x1] %vm662, %v776
        %796 = vst.msk [vmem:[%s186 + $0x53] sm:$0x1] %vm662, %v778
        %797 = vst.msk [vmem:[%s186 + $0x63] sm:$0x1] %vm662, %v780
        %798 = vst.msk [vmem:[%s186 + $0x73] sm:$0x1] %vm662, %v782
        %799 = vrot.lane.b32.xlu0 %v674, 56
        %v800 = vpop.permute.xlu0 %799
        %801 = vrot.lane.b32.xlu0 %v678, 56
        %v802 = vpop.permute.xlu0 %801
        %803 = vrot.lane.b32.xlu0 %v682, 56
        %v804 = vpop.permute.xlu0 %803
        %805 = vrot.lane.b32.xlu0 %v686, 56
        %v806 = vpop.permute.xlu0 %805
        %807 = vrot.lane.b32.xlu0 %v690, 56
        %v808 = vpop.permute.xlu0 %807
        %809 = vrot.lane.b32.xlu0 %v694, 56
        %v810 = vpop.permute.xlu0 %809
        %811 = vrot.lane.b32.xlu0 %v698, 56
        %v812 = vpop.permute.xlu0 %811
        %813 = vrot.lane.b32.xlu0 %v702, 56
        %v814 = vpop.permute.xlu0 %813
        %823 = vst.msk [vmem:[%s186 + $0x4] sm:$0x1] %vm662, %v800
        %824 = vst.msk [vmem:[%s186 + $0x14] sm:$0x1] %vm662, %v802
        %825 = vst.msk [vmem:[%s186 + $0x24] sm:$0x1] %vm662, %v804
        %826 = vst.msk [vmem:[%s186 + $0x34] sm:$0x1] %vm662, %v806
        %827 = vst.msk [vmem:[%s186 + $0x44] sm:$0x1] %vm662, %v808
        %828 = vst.msk [vmem:[%s186 + $0x54] sm:$0x1] %vm662, %v810
        %829 = vst.msk [vmem:[%s186 + $0x64] sm:$0x1] %vm662, %v812
        %830 = vst.msk [vmem:[%s186 + $0x74] sm:$0x1] %vm662, %v814
        %831 = vrot.lane.b32.xlu0 %v674, 38
        %v832 = vpop.permute.xlu0 %831
        %833 = vrot.lane.b32.xlu0 %v678, 38
        %v834 = vpop.permute.xlu0 %833
        %835 = vrot.lane.b32.xlu0 %v682, 38
        %v836 = vpop.permute.xlu0 %835
        %837 = vrot.lane.b32.xlu0 %v686, 38
        %v838 = vpop.permute.xlu0 %837
        %839 = vrot.lane.b32.xlu0 %v690, 38
        %v840 = vpop.permute.xlu0 %839
        %841 = vrot.lane.b32.xlu0 %v694, 38
        %v842 = vpop.permute.xlu0 %841
        %843 = vrot.lane.b32.xlu0 %v698, 38
        %v844 = vpop.permute.xlu0 %843
        %845 = vrot.lane.b32.xlu0 %v702, 38
        %v846 = vpop.permute.xlu0 %845
        %855 = vst.msk [vmem:[%s186 + $0x5] sm:$0x1] %vm662, %v832
        %856 = vst.msk [vmem:[%s186 + $0x15] sm:$0x1] %vm662, %v834
        %857 = vst.msk [vmem:[%s186 + $0x25] sm:$0x1] %vm662, %v836
        %858 = vst.msk [vmem:[%s186 + $0x35] sm:$0x1] %vm662, %v838
        %859 = vst.msk [vmem:[%s186 + $0x45] sm:$0x1] %vm662, %v840
        %860 = vst.msk [vmem:[%s186 + $0x55] sm:$0x1] %vm662, %v842
        %861 = vst.msk [vmem:[%s186 + $0x65] sm:$0x1] %vm662, %v844
        %862 = vst.msk [vmem:[%s186 + $0x75] sm:$0x1] %vm662, %v846
        %863 = vrot.lane.b32.xlu0 %v674, 20
        %v864 = vpop.permute.xlu0 %863
        %865 = vrot.lane.b32.xlu0 %v678, 20
        %v866 = vpop.permute.xlu0 %865
        %867 = vrot.lane.b32.xlu0 %v682, 20
        %v868 = vpop.permute.xlu0 %867
        %869 = vrot.lane.b32.xlu0 %v686, 20
        %v870 = vpop.permute.xlu0 %869
        %871 = vrot.lane.b32.xlu0 %v690, 20
        %v872 = vpop.permute.xlu0 %871
        %873 = vrot.lane.b32.xlu0 %v694, 20
        %v874 = vpop.permute.xlu0 %873
        %875 = vrot.lane.b32.xlu0 %v698, 20
        %v876 = vpop.permute.xlu0 %875
        %877 = vrot.lane.b32.xlu0 %v702, 20
        %v878 = vpop.permute.xlu0 %877
        %887 = vst.msk [vmem:[%s186 + $0x6] sm:$0x1] %vm662, %v864
        %888 = vst.msk [vmem:[%s186 + $0x16] sm:$0x1] %vm662, %v866
        %889 = vst.msk [vmem:[%s186 + $0x26] sm:$0x1] %vm662, %v868
        %890 = vst.msk [vmem:[%s186 + $0x36] sm:$0x1] %vm662, %v870
        %891 = vst.msk [vmem:[%s186 + $0x46] sm:$0x1] %vm662, %v872
        %892 = vst.msk [vmem:[%s186 + $0x56] sm:$0x1] %vm662, %v874
        %893 = vst.msk [vmem:[%s186 + $0x66] sm:$0x1] %vm662, %v876
        %894 = vst.msk [vmem:[%s186 + $0x76] sm:$0x1] %vm662, %v878
        %v896 = vcombine.low %v558, %v560
        %v897 = vcombine.high %v558, %v560
        %v899 = vunpack.c.l.s4 1966171168
        %v900 = vunpack.c.0.s8 %v899
        %v901 = vlaneseq
        %v902 = vshrl.u32 %v901, 7
        %v903 = vsub.s32 %v900, %v902
        %v904 = vrot.slane %v896, %v903
        %v906 = vunpack.c.l.s4 1966171168
        %v907 = vunpack.c.0.s8 %v906
        %v908 = vlaneseq
        %v909 = vshrl.u32 %v908, 7
        %v910 = vsub.s32 %v907, %v909
        %v911 = vrot.slane %v897, %v910
        %v912 = vcombine.high %v904, %v904
        %v913 = vcombine.high %v911, %v911
        %v915 = vunpack.c.l.s4 1966171168
        %v916 = vunpack.c.0.s8 %v915
        %v917 = vlaneseq
        %v918 = vshrl.u32 %v917, 7
        %v919 = vsub.s32 %v916, %v918
        %v920 = vrot.slane %v904, %v919
        %v922 = vunpack.c.l.s4 1966171168
        %v923 = vunpack.c.0.s8 %v922
        %v924 = vlaneseq
        %v925 = vshrl.u32 %v924, 7
        %v926 = vsub.s32 %v923, %v925
        %v927 = vrot.slane %v911, %v926
        %v929 = vunpack.c.l.s4 1966171168
        %v930 = vunpack.c.0.s8 %v929
        %v931 = vlaneseq
        %v932 = vshrl.u32 %v931, 7
        %v933 = vsub.s32 %v930, %v932
        %v934 = vrot.slane %v912, %v933
        %v936 = vunpack.c.l.s4 1966171168
        %v937 = vunpack.c.0.s8 %v936
        %v938 = vlaneseq
        %v939 = vshrl.u32 %v938, 7
        %v940 = vsub.s32 %v937, %v939
        %v941 = vrot.slane %v913, %v940
        %v942 = vcombine.high %v920, %v920
        %v943 = vcombine.high %v927, %v927
        %v944 = vcombine.high %v934, %v934
        %v945 = vcombine.high %v941, %v941
        %v946 = vlaneseq
        %v947 = vshrl.u32 %v946, 7
        %v948 = vsub.s32 0, %v947
        %v949 = vrot.slane %v920, %v948
        %v950 = vlaneseq
        %v951 = vshrl.u32 %v950, 7
        %v952 = vsub.s32 1, %v951
        %v953 = vrot.slane %v920, %v952
        %v954 = vlaneseq
        %v955 = vshrl.u32 %v954, 7
        %v956 = vsub.s32 0, %v955
        %v957 = vrot.slane %v934, %v956
        %v958 = vlaneseq
        %v959 = vshrl.u32 %v958, 7
        %v960 = vsub.s32 1, %v959
        %v961 = vrot.slane %v934, %v960
        %v962 = vlaneseq
        %v963 = vshrl.u32 %v962, 7
        %v964 = vsub.s32 0, %v963
        %v965 = vrot.slane %v942, %v964
        %v966 = vlaneseq
        %v967 = vshrl.u32 %v966, 7
        %v968 = vsub.s32 1, %v967
        %v969 = vrot.slane %v942, %v968
        %v970 = vlaneseq
        %v971 = vshrl.u32 %v970, 7
        %v972 = vsub.s32 0, %v971
        %v973 = vrot.slane %v944, %v972
        %v974 = vlaneseq
        %v975 = vshrl.u32 %v974, 7
        %v976 = vsub.s32 1, %v975
        %v977 = vrot.slane %v944, %v976
        %v978 = vlaneseq
        %v979 = vshrl.u32 %v978, 7
        %v980 = vsub.s32 0, %v979
        %v981 = vrot.slane %v927, %v980
        %v982 = vlaneseq
        %v983 = vshrl.u32 %v982, 7
        %v984 = vsub.s32 1, %v983
        %v985 = vrot.slane %v927, %v984
        %v986 = vlaneseq
        %v987 = vshrl.u32 %v986, 7
        %v988 = vsub.s32 0, %v987
        %v989 = vrot.slane %v941, %v988
        %v990 = vlaneseq
        %v991 = vshrl.u32 %v990, 7
        %v992 = vsub.s32 1, %v991
        %v993 = vrot.slane %v941, %v992
        %v994 = vlaneseq
        %v995 = vshrl.u32 %v994, 7
        %v996 = vsub.s32 0, %v995
        %v997 = vrot.slane %v943, %v996
        %v998 = vlaneseq
        %v999 = vshrl.u32 %v998, 7
        %v1000 = vsub.s32 1, %v999
        %v1001 = vrot.slane %v943, %v1000
        %v1002 = vlaneseq
        %v1003 = vshrl.u32 %v1002, 7
        %v1004 = vsub.s32 0, %v1003
        %v1005 = vrot.slane %v945, %v1004
        %v1006 = vlaneseq
        %v1007 = vshrl.u32 %v1006, 7
        %v1008 = vsub.s32 1, %v1007
        %v1009 = vrot.slane %v945, %v1008
        %1010 = vrot.lane.b32.xlu0 %v949, 2
        %v1011 = vpop.permute.xlu0 %1010
        %1012 = vrot.lane.b32.xlu0 %v953, 2
        %v1013 = vpop.permute.xlu0 %1012
        %1014 = vrot.lane.b32.xlu0 %v957, 2
        %v1015 = vpop.permute.xlu0 %1014
        %1016 = vrot.lane.b32.xlu0 %v961, 2
        %v1017 = vpop.permute.xlu0 %1016
        %1018 = vrot.lane.b32.xlu0 %v965, 2
        %v1019 = vpop.permute.xlu0 %1018
        %1020 = vrot.lane.b32.xlu0 %v969, 2
        %v1021 = vpop.permute.xlu0 %1020
        %1022 = vrot.lane.b32.xlu0 %v973, 2
        %v1023 = vpop.permute.xlu0 %1022
        %1024 = vrot.lane.b32.xlu0 %v977, 2
        %v1025 = vpop.permute.xlu0 %1024
        %1026 = vrot.lane.b32.xlu0 %v981, 2
        %v1027 = vpop.permute.xlu0 %1026
        %1028 = vrot.lane.b32.xlu0 %v985, 2
        %v1029 = vpop.permute.xlu0 %1028
        %1030 = vrot.lane.b32.xlu0 %v989, 2
        %v1031 = vpop.permute.xlu0 %1030
        %1032 = vrot.lane.b32.xlu0 %v993, 2
        %v1033 = vpop.permute.xlu0 %1032
        %1034 = vrot.lane.b32.xlu0 %v997, 2
        %v1035 = vpop.permute.xlu0 %1034
        %1036 = vrot.lane.b32.xlu0 %v1001, 2
        %v1037 = vpop.permute.xlu0 %1036
        %1038 = vrot.lane.b32.xlu0 %v1005, 2
        %v1039 = vpop.permute.xlu0 %1038
        %1040 = vrot.lane.b32.xlu0 %v1009, 2
        %v1041 = vpop.permute.xlu0 %1040
        %vm1042 = vcmask 15360
        %v1043 = vsel %vm1042, %v1011, %v1013
        %v1044 = vsel %vm1042, %v1015, %v1017
        %v1045 = vsel %vm1042, %v1019, %v1021
        %v1046 = vsel %vm1042, %v1023, %v1025
        %v1047 = vsel %vm1042, %v1027, %v1029
        %v1048 = vsel %vm1042, %v1031, %v1033
        %v1049 = vsel %vm1042, %v1035, %v1037
        %v1050 = vsel %vm1042, %v1039, %v1041
        %1059 = vst.msk [vmem:[%s186 + $0x7] sm:$0x1] %vm662, %v1043
        %1060 = vst.msk [vmem:[%s186 + $0x17] sm:$0x1] %vm662, %v1044
        %1061 = vst.msk [vmem:[%s186 + $0x27] sm:$0x1] %vm662, %v1045
        %1062 = vst.msk [vmem:[%s186 + $0x37] sm:$0x1] %vm662, %v1046
        %1063 = vst.msk [vmem:[%s186 + $0x47] sm:$0x1] %vm662, %v1047
        %1064 = vst.msk [vmem:[%s186 + $0x57] sm:$0x1] %vm662, %v1048
        %1065 = vst.msk [vmem:[%s186 + $0x67] sm:$0x1] %vm662, %v1049
        %1066 = vst.msk [vmem:[%s186 + $0x77] sm:$0x1] %vm662, %v1050
        %v1067 = vcombine.high %v560, %v560
        %v1069 = vunpack.c.l.s4 1966171168
        %v1070 = vunpack.c.0.s8 %v1069
        %v1071 = vlaneseq
        %v1072 = vshrl.u32 %v1071, 7
        %v1073 = vsub.s32 %v1070, %v1072
        %v1074 = vrot.slane %v560, %v1073
        %v1076 = vunpack.c.l.s4 1966171168
        %v1077 = vunpack.c.0.s8 %v1076
        %v1078 = vlaneseq
        %v1079 = vshrl.u32 %v1078, 7
        %v1080 = vsub.s32 %v1077, %v1079
        %v1081 = vrot.slane %v1067, %v1080
        %v1082 = vcombine.high %v1074, %v1074
        %v1083 = vcombine.high %v1081, %v1081
        %v1085 = vunpack.c.l.s4 1966171168
        %v1086 = vunpack.c.0.s8 %v1085
        %v1087 = vlaneseq
        %v1088 = vshrl.u32 %v1087, 7
        %v1089 = vsub.s32 %v1086, %v1088
        %v1090 = vrot.slane %v1074, %v1089
        %v1092 = vunpack.c.l.s4 1966171168
        %v1093 = vunpack.c.0.s8 %v1092
        %v1094 = vlaneseq
        %v1095 = vshrl.u32 %v1094, 7
        %v1096 = vsub.s32 %v1093, %v1095
        %v1097 = vrot.slane %v1081, %v1096
        %v1099 = vunpack.c.l.s4 1966171168
        %v1100 = vunpack.c.0.s8 %v1099
        %v1101 = vlaneseq
        %v1102 = vshrl.u32 %v1101, 7
        %v1103 = vsub.s32 %v1100, %v1102
        %v1104 = vrot.slane %v1082, %v1103
        %v1106 = vunpack.c.l.s4 1966171168
        %v1107 = vunpack.c.0.s8 %v1106
        %v1108 = vlaneseq
        %v1109 = vshrl.u32 %v1108, 7
        %v1110 = vsub.s32 %v1107, %v1109
        %v1111 = vrot.slane %v1083, %v1110
        %v1112 = vcombine.high %v1090, %v1090
        %v1113 = vcombine.high %v1097, %v1097
        %v1114 = vcombine.high %v1104, %v1104
        %v1115 = vcombine.high %v1111, %v1111
        %v1116 = vlaneseq
        %v1117 = vshrl.u32 %v1116, 7
        %v1118 = vsub.s32 0, %v1117
        %v1119 = vrot.slane %v1090, %v1118
        %v1120 = vlaneseq
        %v1121 = vshrl.u32 %v1120, 7
        %v1122 = vsub.s32 0, %v1121
        %v1123 = vrot.slane %v1104, %v1122
        %v1124 = vlaneseq
        %v1125 = vshrl.u32 %v1124, 7
        %v1126 = vsub.s32 0, %v1125
        %v1127 = vrot.slane %v1112, %v1126
        %v1128 = vlaneseq
        %v1129 = vshrl.u32 %v1128, 7
        %v1130 = vsub.s32 0, %v1129
        %v1131 = vrot.slane %v1114, %v1130
        %v1132 = vlaneseq
        %v1133 = vshrl.u32 %v1132, 7
        %v1134 = vsub.s32 0, %v1133
        %v1135 = vrot.slane %v1097, %v1134
        %v1136 = vlaneseq
        %v1137 = vshrl.u32 %v1136, 7
        %v1138 = vsub.s32 0, %v1137
        %v1139 = vrot.slane %v1111, %v1138
        %v1140 = vlaneseq
        %v1141 = vshrl.u32 %v1140, 7
        %v1142 = vsub.s32 0, %v1141
        %v1143 = vrot.slane %v1113, %v1142
        %v1144 = vlaneseq
        %v1145 = vshrl.u32 %v1144, 7
        %v1146 = vsub.s32 0, %v1145
        %v1147 = vrot.slane %v1115, %v1146
        %1148 = vrot.lane.b32.xlu0 %v1119, 112
        %v1149 = vpop.permute.xlu0 %1148
        %1150 = vrot.lane.b32.xlu0 %v1123, 112
        %v1151 = vpop.permute.xlu0 %1150
        %1152 = vrot.lane.b32.xlu0 %v1127, 112
        %v1153 = vpop.permute.xlu0 %1152
        %1154 = vrot.lane.b32.xlu0 %v1131, 112
        %v1155 = vpop.permute.xlu0 %1154
        %1156 = vrot.lane.b32.xlu0 %v1135, 112
        %v1157 = vpop.permute.xlu0 %1156
        %1158 = vrot.lane.b32.xlu0 %v1139, 112
        %v1159 = vpop.permute.xlu0 %1158
        %1160 = vrot.lane.b32.xlu0 %v1143, 112
        %v1161 = vpop.permute.xlu0 %1160
        %1162 = vrot.lane.b32.xlu0 %v1147, 112
        %v1163 = vpop.permute.xlu0 %1162
        %1172 = vst.msk [vmem:[%s186 + $0x8] sm:$0x1] %vm662, %v1149
        %1173 = vst.msk [vmem:[%s186 + $0x18] sm:$0x1] %vm662, %v1151
        %1174 = vst.msk [vmem:[%s186 + $0x28] sm:$0x1] %vm662, %v1153
        %1175 = vst.msk [vmem:[%s186 + $0x38] sm:$0x1] %vm662, %v1155
        %1176 = vst.msk [vmem:[%s186 + $0x48] sm:$0x1] %vm662, %v1157
        %1177 = vst.msk [vmem:[%s186 + $0x58] sm:$0x1] %vm662, %v1159
        %1178 = vst.msk [vmem:[%s186 + $0x68] sm:$0x1] %vm662, %v1161
        %1179 = vst.msk [vmem:[%s186 + $0x78] sm:$0x1] %vm662, %v1163
        %1180 = vrot.lane.b32.xlu0 %v1119, 94
        %v1181 = vpop.permute.xlu0 %1180
        %1182 = vrot.lane.b32.xlu0 %v1123, 94
        %v1183 = vpop.permute.xlu0 %1182
        %1184 = vrot.lane.b32.xlu0 %v1127, 94
        %v1185 = vpop.permute.xlu0 %1184
        %1186 = vrot.lane.b32.xlu0 %v1131, 94
        %v1187 = vpop.permute.xlu0 %1186
        %1188 = vrot.lane.b32.xlu0 %v1135, 94
        %v1189 = vpop.permute.xlu0 %1188
        %1190 = vrot.lane.b32.xlu0 %v1139, 94
        %v1191 = vpop.permute.xlu0 %1190
        %1192 = vrot.lane.b32.xlu0 %v1143, 94
        %v1193 = vpop.permute.xlu0 %1192
        %1194 = vrot.lane.b32.xlu0 %v1147, 94
        %v1195 = vpop.permute.xlu0 %1194
        %1204 = vst.msk [vmem:[%s186 + $0x9] sm:$0x1] %vm662, %v1181
        %1205 = vst.msk [vmem:[%s186 + $0x19] sm:$0x1] %vm662, %v1183
        %1206 = vst.msk [vmem:[%s186 + $0x29] sm:$0x1] %vm662, %v1185
        %1207 = vst.msk [vmem:[%s186 + $0x39] sm:$0x1] %vm662, %v1187
        %1208 = vst.msk [vmem:[%s186 + $0x49] sm:$0x1] %vm662, %v1189
        %1209 = vst.msk [vmem:[%s186 + $0x59] sm:$0x1] %vm662, %v1191
        %1210 = vst.msk [vmem:[%s186 + $0x69] sm:$0x1] %vm662, %v1193
        %1211 = vst.msk [vmem:[%s186 + $0x79] sm:$0x1] %vm662, %v1195
        %1212 = vrot.lane.b32.xlu0 %v1119, 76
        %v1213 = vpop.permute.xlu0 %1212
        %1214 = vrot.lane.b32.xlu0 %v1123, 76
        %v1215 = vpop.permute.xlu0 %1214
        %1216 = vrot.lane.b32.xlu0 %v1127, 76
        %v1217 = vpop.permute.xlu0 %1216
        %1218 = vrot.lane.b32.xlu0 %v1131, 76
        %v1219 = vpop.permute.xlu0 %1218
        %1220 = vrot.lane.b32.xlu0 %v1135, 76
        %v1221 = vpop.permute.xlu0 %1220
        %1222 = vrot.lane.b32.xlu0 %v1139, 76
        %v1223 = vpop.permute.xlu0 %1222
        %1224 = vrot.lane.b32.xlu0 %v1143, 76
        %v1225 = vpop.permute.xlu0 %1224
        %1226 = vrot.lane.b32.xlu0 %v1147, 76
        %v1227 = vpop.permute.xlu0 %1226
        %1236 = vst.msk [vmem:[%s186 + $0xa] sm:$0x1] %vm662, %v1213
        %1237 = vst.msk [vmem:[%s186 + $0x1a] sm:$0x1] %vm662, %v1215
        %1238 = vst.msk [vmem:[%s186 + $0x2a] sm:$0x1] %vm662, %v1217
        %1239 = vst.msk [vmem:[%s186 + $0x3a] sm:$0x1] %vm662, %v1219
        %1240 = vst.msk [vmem:[%s186 + $0x4a] sm:$0x1] %vm662, %v1221
        %1241 = vst.msk [vmem:[%s186 + $0x5a] sm:$0x1] %vm662, %v1223
        %1242 = vst.msk [vmem:[%s186 + $0x6a] sm:$0x1] %vm662, %v1225
        %1243 = vst.msk [vmem:[%s186 + $0x7a] sm:$0x1] %vm662, %v1227
        %1244 = vrot.lane.b32.xlu0 %v1119, 58
        %v1245 = vpop.permute.xlu0 %1244
        %1246 = vrot.lane.b32.xlu0 %v1123, 58
        %v1247 = vpop.permute.xlu0 %1246
        %1248 = vrot.lane.b32.xlu0 %v1127, 58
        %v1249 = vpop.permute.xlu0 %1248
        %1250 = vrot.lane.b32.xlu0 %v1131, 58
        %v1251 = vpop.permute.xlu0 %1250
        %1252 = vrot.lane.b32.xlu0 %v1135, 58
        %v1253 = vpop.permute.xlu0 %1252
        %1254 = vrot.lane.b32.xlu0 %v1139, 58
        %v1255 = vpop.permute.xlu0 %1254
        %1256 = vrot.lane.b32.xlu0 %v1143, 58
        %v1257 = vpop.permute.xlu0 %1256
        %1258 = vrot.lane.b32.xlu0 %v1147, 58
        %v1259 = vpop.permute.xlu0 %1258
        %1268 = vst.msk [vmem:[%s186 + $0xb] sm:$0x1] %vm662, %v1245
        %1269 = vst.msk [vmem:[%s186 + $0x1b] sm:$0x1] %vm662, %v1247
        %1270 = vst.msk [vmem:[%s186 + $0x2b] sm:$0x1] %vm662, %v1249
        %1271 = vst.msk [vmem:[%s186 + $0x3b] sm:$0x1] %vm662, %v1251
        %1272 = vst.msk [vmem:[%s186 + $0x4b] sm:$0x1] %vm662, %v1253
        %1273 = vst.msk [vmem:[%s186 + $0x5b] sm:$0x1] %vm662, %v1255
        %1274 = vst.msk [vmem:[%s186 + $0x6b] sm:$0x1] %vm662, %v1257
        %1275 = vst.msk [vmem:[%s186 + $0x7b] sm:$0x1] %vm662, %v1259
        %1276 = vrot.lane.b32.xlu0 %v1119, 40
        %v1277 = vpop.permute.xlu0 %1276
        %1278 = vrot.lane.b32.xlu0 %v1123, 40
        %v1279 = vpop.permute.xlu0 %1278
        %1280 = vrot.lane.b32.xlu0 %v1127, 40
        %v1281 = vpop.permute.xlu0 %1280
        %1282 = vrot.lane.b32.xlu0 %v1131, 40
        %v1283 = vpop.permute.xlu0 %1282
        %1284 = vrot.lane.b32.xlu0 %v1135, 40
        %v1285 = vpop.permute.xlu0 %1284
        %1286 = vrot.lane.b32.xlu0 %v1139, 40
        %v1287 = vpop.permute.xlu0 %1286
        %1288 = vrot.lane.b32.xlu0 %v1143, 40
        %v1289 = vpop.permute.xlu0 %1288
        %1290 = vrot.lane.b32.xlu0 %v1147, 40
        %v1291 = vpop.permute.xlu0 %1290
        %1300 = vst.msk [vmem:[%s186 + $0xc] sm:$0x1] %vm662, %v1277
        %1301 = vst.msk [vmem:[%s186 + $0x1c] sm:$0x1] %vm662, %v1279
        %1302 = vst.msk [vmem:[%s186 + $0x2c] sm:$0x1] %vm662, %v1281
        %1303 = vst.msk [vmem:[%s186 + $0x3c] sm:$0x1] %vm662, %v1283
        %1304 = vst.msk [vmem:[%s186 + $0x4c] sm:$0x1] %vm662, %v1285
        %1305 = vst.msk [vmem:[%s186 + $0x5c] sm:$0x1] %vm662, %v1287
        %1306 = vst.msk [vmem:[%s186 + $0x6c] sm:$0x1] %vm662, %v1289
        %1307 = vst.msk [vmem:[%s186 + $0x7c] sm:$0x1] %vm662, %v1291
        %1308 = vrot.lane.b32.xlu0 %v1119, 22
        %v1309 = vpop.permute.xlu0 %1308
        %1310 = vrot.lane.b32.xlu0 %v1123, 22
        %v1311 = vpop.permute.xlu0 %1310
        %1312 = vrot.lane.b32.xlu0 %v1127, 22
        %v1313 = vpop.permute.xlu0 %1312
        %1314 = vrot.lane.b32.xlu0 %v1131, 22
        %v1315 = vpop.permute.xlu0 %1314
        %1316 = vrot.lane.b32.xlu0 %v1135, 22
        %v1317 = vpop.permute.xlu0 %1316
        %1318 = vrot.lane.b32.xlu0 %v1139, 22
        %v1319 = vpop.permute.xlu0 %1318
        %1320 = vrot.lane.b32.xlu0 %v1143, 22
        %v1321 = vpop.permute.xlu0 %1320
        %1322 = vrot.lane.b32.xlu0 %v1147, 22
        %v1323 = vpop.permute.xlu0 %1322
        %1332 = vst.msk [vmem:[%s186 + $0xd] sm:$0x1] %vm662, %v1309
        %1333 = vst.msk [vmem:[%s186 + $0x1d] sm:$0x1] %vm662, %v1311
        %1334 = vst.msk [vmem:[%s186 + $0x2d] sm:$0x1] %vm662, %v1313
        %1335 = vst.msk [vmem:[%s186 + $0x3d] sm:$0x1] %vm662, %v1315
        %1336 = vst.msk [vmem:[%s186 + $0x4d] sm:$0x1] %vm662, %v1317
        %1337 = vst.msk [vmem:[%s186 + $0x5d] sm:$0x1] %vm662, %v1319
        %1338 = vst.msk [vmem:[%s186 + $0x6d] sm:$0x1] %vm662, %v1321
        %1339 = vst.msk [vmem:[%s186 + $0x7d] sm:$0x1] %vm662, %v1323
        %v1341 = vcombine.low %v560, %v599
        %v1342 = vcombine.high %v560, %v599
        %v1344 = vunpack.c.l.s4 1966171168
        %v1345 = vunpack.c.0.s8 %v1344
        %v1346 = vlaneseq
        %v1347 = vshrl.u32 %v1346, 7
        %v1348 = vsub.s32 %v1345, %v1347
        %v1349 = vrot.slane %v1341, %v1348
        %v1351 = vunpack.c.l.s4 1966171168
        %v1352 = vunpack.c.0.s8 %v1351
        %v1353 = vlaneseq
        %v1354 = vshrl.u32 %v1353, 7
        %v1355 = vsub.s32 %v1352, %v1354
        %v1356 = vrot.slane %v1342, %v1355
        %v1357 = vcombine.high %v1349, %v1349
        %v1358 = vcombine.high %v1356, %v1356
        %v1360 = vunpack.c.l.s4 1966171168
        %v1361 = vunpack.c.0.s8 %v1360
        %v1362 = vlaneseq
        %v1363 = vshrl.u32 %v1362, 7
        %v1364 = vsub.s32 %v1361, %v1363
        %v1365 = vrot.slane %v1349, %v1364
        %v1367 = vunpack.c.l.s4 1966171168
        %v1368 = vunpack.c.0.s8 %v1367
        %v1369 = vlaneseq
        %v1370 = vshrl.u32 %v1369, 7
        %v1371 = vsub.s32 %v1368, %v1370
        %v1372 = vrot.slane %v1356, %v1371
        %v1374 = vunpack.c.l.s4 1966171168
        %v1375 = vunpack.c.0.s8 %v1374
        %v1376 = vlaneseq
        %v1377 = vshrl.u32 %v1376, 7
        %v1378 = vsub.s32 %v1375, %v1377
        %v1379 = vrot.slane %v1357, %v1378
        %v1381 = vunpack.c.l.s4 1966171168
        %v1382 = vunpack.c.0.s8 %v1381
        %v1383 = vlaneseq
        %v1384 = vshrl.u32 %v1383, 7
        %v1385 = vsub.s32 %v1382, %v1384
        %v1386 = vrot.slane %v1358, %v1385
        %v1387 = vcombine.high %v1365, %v1365
        %v1388 = vcombine.high %v1372, %v1372
        %v1389 = vcombine.high %v1379, %v1379
        %v1390 = vcombine.high %v1386, %v1386
        %v1391 = vlaneseq
        %v1392 = vshrl.u32 %v1391, 7
        %v1393 = vsub.s32 0, %v1392
        %v1394 = vrot.slane %v1365, %v1393
        %v1395 = vlaneseq
        %v1396 = vshrl.u32 %v1395, 7
        %v1397 = vsub.s32 1, %v1396
        %v1398 = vrot.slane %v1365, %v1397
        %v1399 = vlaneseq
        %v1400 = vshrl.u32 %v1399, 7
        %v1401 = vsub.s32 0, %v1400
        %v1402 = vrot.slane %v1379, %v1401
        %v1403 = vlaneseq
        %v1404 = vshrl.u32 %v1403, 7
        %v1405 = vsub.s32 1, %v1404
        %v1406 = vrot.slane %v1379, %v1405
        %v1407 = vlaneseq
        %v1408 = vshrl.u32 %v1407, 7
        %v1409 = vsub.s32 0, %v1408
        %v1410 = vrot.slane %v1387, %v1409
        %v1411 = vlaneseq
        %v1412 = vshrl.u32 %v1411, 7
        %v1413 = vsub.s32 1, %v1412
        %v1414 = vrot.slane %v1387, %v1413
        %v1415 = vlaneseq
        %v1416 = vshrl.u32 %v1415, 7
        %v1417 = vsub.s32 0, %v1416
        %v1418 = vrot.slane %v1389, %v1417
        %v1419 = vlaneseq
        %v1420 = vshrl.u32 %v1419, 7
        %v1421 = vsub.s32 1, %v1420
        %v1422 = vrot.slane %v1389, %v1421
        %v1423 = vlaneseq
        %v1424 = vshrl.u32 %v1423, 7
        %v1425 = vsub.s32 0, %v1424
        %v1426 = vrot.slane %v1372, %v1425
        %v1427 = vlaneseq
        %v1428 = vshrl.u32 %v1427, 7
        %v1429 = vsub.s32 1, %v1428
        %v1430 = vrot.slane %v1372, %v1429
        %v1431 = vlaneseq
        %v1432 = vshrl.u32 %v1431, 7
        %v1433 = vsub.s32 0, %v1432
        %v1434 = vrot.slane %v1386, %v1433
        %v1435 = vlaneseq
        %v1436 = vshrl.u32 %v1435, 7
        %v1437 = vsub.s32 1, %v1436
        %v1438 = vrot.slane %v1386, %v1437
        %v1439 = vlaneseq
        %v1440 = vshrl.u32 %v1439, 7
        %v1441 = vsub.s32 0, %v1440
        %v1442 = vrot.slane %v1388, %v1441
        %v1443 = vlaneseq
        %v1444 = vshrl.u32 %v1443, 7
        %v1445 = vsub.s32 1, %v1444
        %v1446 = vrot.slane %v1388, %v1445
        %v1447 = vlaneseq
        %v1448 = vshrl.u32 %v1447, 7
        %v1449 = vsub.s32 0, %v1448
        %v1450 = vrot.slane %v1390, %v1449
        %v1451 = vlaneseq
        %v1452 = vshrl.u32 %v1451, 7
        %v1453 = vsub.s32 1, %v1452
        %v1454 = vrot.slane %v1390, %v1453
        %1455 = vrot.lane.b32.xlu0 %v1394, 4
        %v1456 = vpop.permute.xlu0 %1455
        %1457 = vrot.lane.b32.xlu0 %v1398, 4
        %v1458 = vpop.permute.xlu0 %1457
        %1459 = vrot.lane.b32.xlu0 %v1402, 4
        %v1460 = vpop.permute.xlu0 %1459
        %1461 = vrot.lane.b32.xlu0 %v1406, 4
        %v1462 = vpop.permute.xlu0 %1461
        %1463 = vrot.lane.b32.xlu0 %v1410, 4
        %v1464 = vpop.permute.xlu0 %1463
        %1465 = vrot.lane.b32.xlu0 %v1414, 4
        %v1466 = vpop.permute.xlu0 %1465
        %1467 = vrot.lane.b32.xlu0 %v1418, 4
        %v1468 = vpop.permute.xlu0 %1467
        %1469 = vrot.lane.b32.xlu0 %v1422, 4
        %v1470 = vpop.permute.xlu0 %1469
        %1471 = vrot.lane.b32.xlu0 %v1426, 4
        %v1472 = vpop.permute.xlu0 %1471
        %1473 = vrot.lane.b32.xlu0 %v1430, 4
        %v1474 = vpop.permute.xlu0 %1473
        %1475 = vrot.lane.b32.xlu0 %v1434, 4
        %v1476 = vpop.permute.xlu0 %1475
        %1477 = vrot.lane.b32.xlu0 %v1438, 4
        %v1478 = vpop.permute.xlu0 %1477
        %1479 = vrot.lane.b32.xlu0 %v1442, 4
        %v1480 = vpop.permute.xlu0 %1479
        %1481 = vrot.lane.b32.xlu0 %v1446, 4
        %v1482 = vpop.permute.xlu0 %1481
        %1483 = vrot.lane.b32.xlu0 %v1450, 4
        %v1484 = vpop.permute.xlu0 %1483
        %1485 = vrot.lane.b32.xlu0 %v1454, 4
        %v1486 = vpop.permute.xlu0 %1485
        %vm1487 = vcmask 31744
        %v1488 = vsel %vm1487, %v1456, %v1458
        %v1489 = vsel %vm1487, %v1460, %v1462
        %v1490 = vsel %vm1487, %v1464, %v1466
        %v1491 = vsel %vm1487, %v1468, %v1470
        %v1492 = vsel %vm1487, %v1472, %v1474
        %v1493 = vsel %vm1487, %v1476, %v1478
        %v1494 = vsel %vm1487, %v1480, %v1482
        %v1495 = vsel %vm1487, %v1484, %v1486
        %1504 = vst.msk [vmem:[%s186 + $0xe] sm:$0x1] %vm662, %v1488
        %1505 = vst.msk [vmem:[%s186 + $0x1e] sm:$0x1] %vm662, %v1489
        %1506 = vst.msk [vmem:[%s186 + $0x2e] sm:$0x1] %vm662, %v1490
        %1507 = vst.msk [vmem:[%s186 + $0x3e] sm:$0x1] %vm662, %v1491
        %1508 = vst.msk [vmem:[%s186 + $0x4e] sm:$0x1] %vm662, %v1492
        %1509 = vst.msk [vmem:[%s186 + $0x5e] sm:$0x1] %vm662, %v1493
        %1510 = vst.msk [vmem:[%s186 + $0x6e] sm:$0x1] %vm662, %v1494
        %1511 = vst.msk [vmem:[%s186 + $0x7e] sm:$0x1] %vm662, %v1495
        %v1512 = vcombine.high %v599, %v599
        %v1514 = vunpack.c.l.s4 1966171168
        %v1515 = vunpack.c.0.s8 %v1514
        %v1516 = vlaneseq
        %v1517 = vshrl.u32 %v1516, 7
        %v1518 = vsub.s32 %v1515, %v1517
        %v1519 = vrot.slane %v599, %v1518
        %v1521 = vunpack.c.l.s4 1966171168
        %v1522 = vunpack.c.0.s8 %v1521
        %v1523 = vlaneseq
        %v1524 = vshrl.u32 %v1523, 7
        %v1525 = vsub.s32 %v1522, %v1524
        %v1526 = vrot.slane %v1512, %v1525
        %v1527 = vcombine.high %v1519, %v1519
        %v1528 = vcombine.high %v1526, %v1526
        %v1530 = vunpack.c.l.s4 1966171168
        %v1531 = vunpack.c.0.s8 %v1530
        %v1532 = vlaneseq
        %v1533 = vshrl.u32 %v1532, 7
        %v1534 = vsub.s32 %v1531, %v1533
        %v1535 = vrot.slane %v1519, %v1534
        %v1537 = vunpack.c.l.s4 1966171168
        %v1538 = vunpack.c.0.s8 %v1537
        %v1539 = vlaneseq
        %v1540 = vshrl.u32 %v1539, 7
        %v1541 = vsub.s32 %v1538, %v1540
        %v1542 = vrot.slane %v1526, %v1541
        %v1544 = vunpack.c.l.s4 1966171168
        %v1545 = vunpack.c.0.s8 %v1544
        %v1546 = vlaneseq
        %v1547 = vshrl.u32 %v1546, 7
        %v1548 = vsub.s32 %v1545, %v1547
        %v1549 = vrot.slane %v1527, %v1548
        %v1551 = vunpack.c.l.s4 1966171168
        %v1552 = vunpack.c.0.s8 %v1551
        %v1553 = vlaneseq
        %v1554 = vshrl.u32 %v1553, 7
        %v1555 = vsub.s32 %v1552, %v1554
        %v1556 = vrot.slane %v1528, %v1555
        %v1557 = vcombine.high %v1535, %v1535
        %v1558 = vcombine.high %v1542, %v1542
        %v1559 = vcombine.high %v1549, %v1549
        %v1560 = vcombine.high %v1556, %v1556
        %v1561 = vlaneseq
        %v1562 = vshrl.u32 %v1561, 7
        %v1563 = vsub.s32 0, %v1562
        %v1564 = vrot.slane %v1535, %v1563
        %v1565 = vlaneseq
        %v1566 = vshrl.u32 %v1565, 7
        %v1567 = vsub.s32 0, %v1566
        %v1568 = vrot.slane %v1549, %v1567
        %v1569 = vlaneseq
        %v1570 = vshrl.u32 %v1569, 7
        %v1571 = vsub.s32 0, %v1570
        %v1572 = vrot.slane %v1557, %v1571
        %v1573 = vlaneseq
        %v1574 = vshrl.u32 %v1573, 7
        %v1575 = vsub.s32 0, %v1574
        %v1576 = vrot.slane %v1559, %v1575
        %v1577 = vlaneseq
        %v1578 = vshrl.u32 %v1577, 7
        %v1579 = vsub.s32 0, %v1578
        %v1580 = vrot.slane %v1542, %v1579
        %v1581 = vlaneseq
        %v1582 = vshrl.u32 %v1581, 7
        %v1583 = vsub.s32 0, %v1582
        %v1584 = vrot.slane %v1556, %v1583
        %v1585 = vlaneseq
        %v1586 = vshrl.u32 %v1585, 7
        %v1587 = vsub.s32 0, %v1586
        %v1588 = vrot.slane %v1558, %v1587
        %v1589 = vlaneseq
        %v1590 = vshrl.u32 %v1589, 7
        %v1591 = vsub.s32 0, %v1590
        %v1592 = vrot.slane %v1560, %v1591
        %1593 = vrot.lane.b32.xlu0 %v1564, 114
        %v1594 = vpop.permute.xlu0 %1593
        %1595 = vrot.lane.b32.xlu0 %v1568, 114
        %v1596 = vpop.permute.xlu0 %1595
        %1597 = vrot.lane.b32.xlu0 %v1572, 114
        %v1598 = vpop.permute.xlu0 %1597
        %1599 = vrot.lane.b32.xlu0 %v1576, 114
        %v1600 = vpop.permute.xlu0 %1599
        %1601 = vrot.lane.b32.xlu0 %v1580, 114
        %v1602 = vpop.permute.xlu0 %1601
        %1603 = vrot.lane.b32.xlu0 %v1584, 114
        %v1604 = vpop.permute.xlu0 %1603
        %1605 = vrot.lane.b32.xlu0 %v1588, 114
        %v1606 = vpop.permute.xlu0 %1605
        %1607 = vrot.lane.b32.xlu0 %v1592, 114
        %v1608 = vpop.permute.xlu0 %1607
        %1617 = vst.msk [vmem:[%s186 + $0xf] sm:$0x1] %vm662, %v1594
        %1618 = vst.msk [vmem:[%s186 + $0x1f] sm:$0x1] %vm662, %v1596
        %1619 = vst.msk [vmem:[%s186 + $0x2f] sm:$0x1] %vm662, %v1598
        %1620 = vst.msk [vmem:[%s186 + $0x3f] sm:$0x1] %vm662, %v1600
        %1621 = vst.msk [vmem:[%s186 + $0x4f] sm:$0x1] %vm662, %v1602
        %1622 = vst.msk [vmem:[%s186 + $0x5f] sm:$0x1] %vm662, %v1604
        %1623 = vst.msk [vmem:[%s186 + $0x6f] sm:$0x1] %vm662, %v1606
        %1624 = vst.msk [vmem:[%s186 + $0x7f] sm:$0x1] %vm662, %v1608
        %s1625 = sand.u32 %s96, 1
        %s1626 = scalar_lea.sflag [#allocation5], %s1625
        %s1627 = sand.u32 %s96, 1
        %s1628 = smul.addr %s1627, 128
        %s1629 = scalar_lea.vmem [#allocation6], %s1628
        // Predicated region
        $region37: #{tpu_custom_call.1} parent=31 // pred_check
          %p1630 = pneg %p106
        $region38: #{tpu_custom_call.1} parent=31 // pred_check_branch
          %1632 = sbr.rel (%p1630) target = $region40
        $region39: #{tpu_custom_call.1} parent=31 // pred_region
          %s1634 = ssub.s32 2048, 2048
          %1635 = vsyncadd %s1626, %s1634
          %s1636 = smul.addr %s20, 16
          %s1637 = smul.addr %s1636, 128
          %s1638 = scalar_lea.hbm %s3, %s1637
          %s1639 = sshll.u32 %s1629, 4
          %s1640 = int_to_ptr.vmem [resolvable:$true] %s1639
          %1645 = dma.vmem_to_hbm [thread:$0]  %s1640, 2048, %s1638, %s1626, 128, 128, 8
        $region40: #{tpu_custom_call.1} parent=31 // pred_fallthru
          _
      $region32: #{tpu_custom_call.1} parent=5 // pred_fallthru
        _
      %p1646 = scmp.le.s32.totalorder 2, %s15
      // Predicated region
      $region41: #{tpu_custom_call.1} parent=5 // pred_check
        %p1647 = pneg %p1646
      $region42: #{tpu_custom_call.1} parent=5 // pred_check_branch
        %1649 = sbr.rel (%p1647) target = $region44
      $region43: #{tpu_custom_call.1} parent=5 // pred_region
        %s1650 = ssub.s32 %s15, 2
        // Predicated region
        $region45: #{tpu_custom_call.1} parent=43 // pred_check
          %p1651 = pneg %p112
        $region46: #{tpu_custom_call.1} parent=43 // pred_check_branch
          %1653 = sbr.rel (%p1651) target = $region48
        $region47: #{tpu_custom_call.1} parent=43 // pred_region
          %s1654 = sand.u32 %s97, 1
          %s1655 = scalar_lea.sflag [#allocation5], %s1654
          %s1656 = sand.u32 %s97, 1
          %s1657 = smul.addr %s1656, 128
          %s1658 = scalar_lea.vmem [#allocation6], %s1657
          %1659 = dma.done %s1655, 2048
        $region48: #{tpu_custom_call.1} parent=43 // pred_fallthru
          _
      $region44: #{tpu_custom_call.1} parent=5 // pred_fallthru
        _
    $region6: #{tpu_custom_call.1} parent=1 // loop_footer
      %s19 = sadd.s32 1, %s15
    $region7: #{tpu_custom_call.1} parent=1 // loop_footer_branch
      %14 = sbr.rel target = $region3
    $region8: #{tpu_custom_call.1} parent=1 // loop_exit
      _
    %1660 = vsyncpa [#allocation4], 1
    %s1661 = scalar_lea.sflag [#allocation4], 1
    %1662 = vsyncpa %s1661, 1
    %1663 = vsyncpa [#allocation5], 1
    %s1664 = scalar_lea.sflag [#allocation5], 1
    %1665 = vsyncpa %s1664, 1

</llo_original>
